<compile_context>
chip_gen: v7x
topology: tpu7x:2x2x1
jax: 0.10.0
libtpu: 0.0.40
codegen_flags: <defaults>
</compile_context>

<pallas_src>
import jax
import jax.numpy as jnp
from jax import lax
from jax.experimental import pallas as pl

B, T, I, H = 2, 8, 16, 32   # batch, seq, input_size, hidden_size
EPS = 1e-5                  # BatchNorm1d default eps
H2, H4, H6 = 2 * H, 4 * H, 6 * H


# ---------------------------------------------------------------------------
# Fused kernel: bidirectional GRU (both directions per step via block-diag weights,
# time loop fully unrolled) + direction sum + BatchNorm1d, single invocation.
#   inputs : x_packed (T*B, 2I), wih_packed (2I, 6H), whh_packed (2H, 6H),
#            gi_bias (1, 6H), bhh_n (1, 2H), h0_cat (B, 2H), gamma/beta (1, H)
#   outputs: out (B, T*H) lane-dense, hn (B, 2H) = [h_fwd_final | h_bwd_final]
# ---------------------------------------------------------------------------
def _gru_bn_kernel(xp_ref, wih_ref, whh_ref, gib_ref, bhhn_ref, h0_ref,
                   gamma_ref, beta_ref, out_ref, hn_ref):
    # ---- phase 0: hoisted input projection (ONE matmul, both dirs, all gates)
    # row s*B+b carries [fwd gi at time s | bwd gi at time T-1-s], bias pre-folded.
    gi_all = jnp.dot(xp_ref[...], wih_ref[...],
                     preferred_element_type=jnp.float32) + gib_ref[...]   # (T*B, 6H)

    whh = whh_ref[...]                                      # (2H, 6H), VMEM resident
    bhh_n = jnp.broadcast_to(bhhn_ref[...], (B, H2))        # hoisted broadcast
    h_cat = h0_ref[...].astype(jnp.float32)                 # (B, 2H) [h_fwd | h_bwd]

    # ---- phase 1: unrolled recurrence, ONE MXU dot per step on the critical path
    hs = []
    for s in range(T):
        gi_s = gi_all[s * B:(s + 1) * B, :]                 # (B, 6H) contiguous slice
        gh = jnp.dot(h_cat, whh, preferred_element_type=jnp.float32)   # (B, 6H)
        rz = jax.nn.sigmoid(gi_s[:, :H4] + gh[:, :H4])      # r|z, both dirs (128 lanes)
        r = rz[:, :H2]                                      # (B, 2H)
        z = rz[:, H2:]                                      # (B, 2H)
        n = jnp.tanh(gi_s[:, H4:] + r * (gh[:, H4:] + bhh_n))
        h_cat = (1.0 - z) * n + z * h_cat                   # both directions at once
        hs.append(h_cat)                                    # register-resident

    hn_ref[...] = h_cat.astype(hn_ref.dtype)                # fwd@T-1 | bwd@0

    # ---- phase 2: direction sum (registers) + fused BatchNorm1d (batch stats)
    ys = [hs[t][:, :H] + hs[T - 1 - t][:, H:] for t in range(T)]      # each (B, H)
    y_all = jnp.concatenate(ys, axis=0)                     # (T*B, H)
    cnt = float(B * T)
    mean = jnp.sum(y_all, axis=0, keepdims=True) * (1.0 / cnt)        # (1, H)
    diff = y_all - mean
    var = jnp.sum(diff * diff, axis=0, keepdims=True) * (1.0 / cnt)   # biased var
    scale = gamma_ref[...] * lax.rsqrt(var + EPS)            # (1, H)
    shift = beta_ref[...] - mean * scale                     # (1, H)
    # single lane-dense store: (B, T*H) = (2, 256)
    out_ref[...] = jnp.concatenate([ys[t] * scale + shift for t in range(T)],
                                   axis=1).astype(out_ref.dtype)


@jax.jit
def rnn_batch_norm(x, h0, w_ih, w_hh, b_ih, b_hh, gamma, beta):
    """x: (B, T, I) batch_first; h0: (2, B, H). Returns ((B, T, H), (2, B, H))."""
    # ---- weight packing: gate-major / direction-blocked columns
    #      col = gate*2H + dir*H + h   with gate order (r, z, n)
    w_ih_t = jnp.transpose(w_ih, (0, 2, 1)).reshape(2, I, 3, H)   # (dir, i, gate, h)
    w_hh_t = jnp.transpose(w_hh, (0, 2, 1)).reshape(2, H, 3, H)   # (dir, hin, gate, h)
    wih_blk = jnp.zeros((2, I, 3, 2, H), x.dtype)
    wih_blk = wih_blk.at[0, :, :, 0, :].set(w_ih_t[0]).at[1, :, :, 1, :].set(w_ih_t[1])
    whh_blk = jnp.zeros((2, H, 3, 2, H), x.dtype)
    whh_blk = whh_blk.at[0, :, :, 0, :].set(w_hh_t[0]).at[1, :, :, 1, :].set(w_hh_t[1])
    wih_packed = wih_blk.reshape(2 * I, H6)    # (2I, 6H) block-diagonal
    whh_packed = whh_blk.reshape(H2, H6)       # (2H, 6H) block-diagonal

    # ---- bias packing: fold b_hh into the hoisted gi bias for r,z; keep n separate
    bih3 = b_ih.reshape(2, 3, H)
    bhh3 = b_hh.reshape(2, 3, H)
    gi_bias = bih3 + bhh3.at[:, 2, :].set(0.0)                      # (dir, gate, h)
    gi_bias = jnp.transpose(gi_bias, (1, 0, 2)).reshape(1, H6)      # (1, 6H)
    bhh_n = bhh3[:, 2, :].reshape(1, H2)                            # (1, 2H) [fwd|bwd]

    # ---- input packing: time-major rows; fwd x(t) and bwd x(T-1-t) side by side
    x_tm = jnp.transpose(x, (1, 0, 2))                              # (T, B, I)
    x_packed = jnp.concatenate(
        [x_tm.reshape(T * B, I), x_tm[::-1].reshape(T * B, I)], axis=1)   # (T*B, 2I)

    h0_cat = jnp.concatenate([h0[0], h0[1]], axis=1)                # (B, 2H)

    out_flat, hn_cat = pl.pallas_call(
        _gru_bn_kernel,
        out_shape=[
            jax.ShapeDtypeStruct((B, T * H), x.dtype),   # lane-dense BN'd output
            jax.ShapeDtypeStruct((B, H2), x.dtype),      # [h_fwd | h_bwd] final
        ],
    )(x_packed, wih_packed, whh_packed, gi_bias, bhh_n, h0_cat,
      gamma.reshape(1, H), beta.reshape(1, H))

    out = out_flat.reshape(B, T, H)                                 # free in XLA
    h_n = jnp.stack([hn_cat[:, :H], hn_cat[:, H:]], axis=0)          # (2, B, H)
    return out, h_n


# ---------------------------------------------------------------------------
# Pure-JAX reference (mirrors torch.nn.GRU + view/sum/view + BatchNorm1d train)
# ---------------------------------------------------------------------------
def _reference(x, h0, w_ih, w_hh, b_ih, b_hh, gamma, beta):
    outs, hT = [], []
    for d in range(2):
        wih, whh, bi, bh = w_ih[d], w_hh[d], b_ih[d], b_hh[d]
        h = h0[d]
        ys = [None] * T
        order = range(T) if d == 0 else range(T - 1, -1, -1)
        for t in order:
            gi = x[:, t] @ wih.T + bi
            gh = h @ whh.T + bh
            r = jax.nn.sigmoid(gi[:, :H] + gh[:, :H])
            z = jax.nn.sigmoid(gi[:, H:2 * H] + gh[:, H:2 * H])
            n = jnp.tanh(gi[:, 2 * H:] + r * gh[:, 2 * H:])
            h = (1 - z) * n + z * h
            ys[t] = h
        outs.append(jnp.stack(ys, axis=1))
        hT.append(h)
    y = outs[0] + outs[1]                      # == view(B,T,2,-1).sum(2)
    h_n = jnp.stack(hT, 0)
    flat = y.reshape(B * T, H)
    mean = flat.mean(0)
    var = ((flat - mean) ** 2).mean(0)
    out = (flat - mean) / jnp.sqrt(var + EPS) * gamma + beta
    return out.reshape(B, T, H), h_n


if __name__ == "__main__":
    key = jax.random.PRNGKey(0)
    ks = jax.random.split(key, 6)
    bound = 1.0 / (H ** 0.5)   # PyTorch RNN init range

    x = jax.random.normal(ks[0], (B, T, I), jnp.float32)
    h0 = jax.random.normal(ks[1], (2, B, H), jnp.float32)
    w_ih = jax.random.uniform(ks[2], (2, 3 * H, I), jnp.float32, -bound, bound)
    w_hh = jax.random.uniform(ks[3], (2, 3 * H, H), jnp.float32, -bound, bound)
    b_ih = jax.random.uniform(ks[4], (2, 3 * H), jnp.float32, -bound, bound)
    b_hh = jax.random.uniform(ks[5], (2, 3 * H), jnp.float32, -bound, bound)
    gamma = jnp.ones((H,), jnp.float32)    # BatchNorm1d default weight
    beta = jnp.zeros((H,), jnp.float32)    # BatchNorm1d default bias

    out, h_n = rnn_batch_norm(x, h0, w_ih, w_hh, b_ih, b_hh, gamma, beta)
    jax.block_until_ready((out, h_n))

    ref_out, ref_h = _reference(x, h0, w_ih, w_hh, b_ih, b_hh, gamma, beta)
    assert out.shape == (B, T, H) and h_n.shape == (2, B, H)
    assert jnp.allclose(out, ref_out, atol=2e-3, rtol=2e-3)
    assert jnp.allclose(h_n, ref_h, atol=2e-3, rtol=2e-3)
    print("KERNEL_OK")
</pallas_src>

<mosaic_0001>
module attributes {stable_mosaic.version = 11 : i64} {
  func.func @_gru_bn_kernel(%arg0: memref<16x32xf32, #tpu.memory_space<vmem>>, %arg1: memref<32x192xf32, #tpu.memory_space<vmem>>, %arg2: memref<64x192xf32, #tpu.memory_space<vmem>>, %arg3: memref<1x192xf32, #tpu.memory_space<vmem>>, %arg4: memref<1x64xf32, #tpu.memory_space<vmem>>, %arg5: memref<2x64xf32, #tpu.memory_space<vmem>>, %arg6: memref<1x32xf32, #tpu.memory_space<vmem>>, %arg7: memref<1x32xf32, #tpu.memory_space<vmem>>, %arg8: memref<2x256xf32, #tpu.memory_space<vmem>>, %arg9: memref<2x64xf32, #tpu.memory_space<vmem>>) attributes {dimension_semantics = [], scalar_prefetch = 0 : i64, scratch_operands = 0 : i64, tpu.core_type = #tpu.core_type<tc>} {
    %c0 = arith.constant 0 : index
    %c0_0 = arith.constant 0 : index
    %0 = vector.load %arg0[%c0, %c0_0] : memref<16x32xf32, #tpu.memory_space<vmem>>, vector<16x32xf32>
    %c0_1 = arith.constant 0 : index
    %c0_2 = arith.constant 0 : index
    %1 = vector.load %arg1[%c0_1, %c0_2] : memref<32x192xf32, #tpu.memory_space<vmem>>, vector<32x192xf32>
    %cst = arith.constant dense<0.000000e+00> : vector<16x192xf32>
    %2 = tpu.matmul %0, %1, %cst {dimension_numbers = #tpu.dot_dimension_numbers<[1], [0], [0], [1], [0, 0, 1, 1], [], []>} : vector<16x32xf32>, vector<32x192xf32>, vector<16x192xf32> -> vector<16x192xf32>
    %c0_3 = arith.constant 0 : index
    %c0_4 = arith.constant 0 : index
    %3 = vector.load %arg3[%c0_3, %c0_4] : memref<1x192xf32, #tpu.memory_space<vmem>>, vector<1x192xf32>
    %4 = vector.broadcast %3 : vector<1x192xf32> to vector<16x192xf32>
    %5 = arith.addf %2, %4 : vector<16x192xf32>
    %c0_5 = arith.constant 0 : index
    %c0_6 = arith.constant 0 : index
    %6 = vector.load %arg2[%c0_5, %c0_6] : memref<64x192xf32, #tpu.memory_space<vmem>>, vector<64x192xf32>
    %c0_7 = arith.constant 0 : index
    %c0_8 = arith.constant 0 : index
    %7 = vector.load %arg4[%c0_7, %c0_8] : memref<1x64xf32, #tpu.memory_space<vmem>>, vector<1x64xf32>
    %8 = vector.shape_cast %7 : vector<1x64xf32> to vector<1x64xf32>
    %9 = vector.broadcast %8 : vector<1x64xf32> to vector<2x64xf32>
    %c0_9 = arith.constant 0 : index
    %c0_10 = arith.constant 0 : index
    %10 = vector.load %arg5[%c0_9, %c0_10] : memref<2x64xf32, #tpu.memory_space<vmem>>, vector<2x64xf32>
    %11 = vector.extract_strided_slice %5 {offsets = [0, 0], sizes = [2, 192], strides = [1, 1]} : vector<16x192xf32> to vector<2x192xf32>
    %cst_11 = arith.constant dense<0.000000e+00> : vector<2x192xf32>
    %12 = tpu.matmul %10, %6, %cst_11 {dimension_numbers = #tpu.dot_dimension_numbers<[1], [0], [0], [1], [0, 0, 1, 1], [], []>} : vector<2x64xf32>, vector<64x192xf32>, vector<2x192xf32> -> vector<2x192xf32>
    %13 = vector.extract_strided_slice %11 {offsets = [0, 0], sizes = [2, 128], strides = [1, 1]} : vector<2x192xf32> to vector<2x128xf32>
    %14 = vector.extract_strided_slice %12 {offsets = [0, 0], sizes = [2, 128], strides = [1, 1]} : vector<2x192xf32> to vector<2x128xf32>
    %15 = arith.addf %13, %14 : vector<2x128xf32>
    %16 = arith.negf %15 : vector<2x128xf32>
    %17 = math.exp %16 : vector<2x128xf32>
    %cst_12 = arith.constant 1.000000e+00 : f32
    %18 = vector.broadcast %cst_12 : f32 to vector<2x128xf32>
    %19 = arith.addf %18, %17 : vector<2x128xf32>
    %20 = arith.divf %18, %19 : vector<2x128xf32>
    %21 = vector.extract_strided_slice %20 {offsets = [0, 0], sizes = [2, 64], strides = [1, 1]} : vector<2x128xf32> to vector<2x64xf32>
    %22 = vector.extract_strided_slice %20 {offsets = [0, 64], sizes = [2, 64], strides = [1, 1]} : vector<2x128xf32> to vector<2x64xf32>
    %23 = vector.extract_strided_slice %11 {offsets = [0, 128], sizes = [2, 64], strides = [1, 1]} : vector<2x192xf32> to vector<2x64xf32>
    %24 = vector.extract_strided_slice %12 {offsets = [0, 128], sizes = [2, 64], strides = [1, 1]} : vector<2x192xf32> to vector<2x64xf32>
    %25 = arith.addf %24, %9 : vector<2x64xf32>
    %26 = arith.mulf %21, %25 : vector<2x64xf32>
    %27 = arith.addf %23, %26 : vector<2x64xf32>
    %28 = math.tanh %27 : vector<2x64xf32>
    %cst_13 = arith.constant 1.000000e+00 : f32
    %29 = vector.broadcast %cst_13 : f32 to vector<2x64xf32>
    %30 = arith.subf %29, %22 : vector<2x64xf32>
    %31 = arith.mulf %30, %28 : vector<2x64xf32>
    %32 = arith.mulf %22, %10 : vector<2x64xf32>
    %33 = arith.addf %31, %32 : vector<2x64xf32>
    %34 = vector.extract_strided_slice %5 {offsets = [2, 0], sizes = [2, 192], strides = [1, 1]} : vector<16x192xf32> to vector<2x192xf32>
    %cst_14 = arith.constant dense<0.000000e+00> : vector<2x192xf32>
    %35 = tpu.matmul %33, %6, %cst_14 {dimension_numbers = #tpu.dot_dimension_numbers<[1], [0], [0], [1], [0, 0, 1, 1], [], []>} : vector<2x64xf32>, vector<64x192xf32>, vector<2x192xf32> -> vector<2x192xf32>
    %36 = vector.extract_strided_slice %34 {offsets = [0, 0], sizes = [2, 128], strides = [1, 1]} : vector<2x192xf32> to vector<2x128xf32>
    %37 = vector.extract_strided_slice %35 {offsets = [0, 0], sizes = [2, 128], strides = [1, 1]} : vector<2x192xf32> to vector<2x128xf32>
    %38 = arith.addf %36, %37 : vector<2x128xf32>
    %39 = arith.negf %38 : vector<2x128xf32>
    %40 = math.exp %39 : vector<2x128xf32>
    %cst_15 = arith.constant 1.000000e+00 : f32
    %41 = vector.broadcast %cst_15 : f32 to vector<2x128xf32>
    %42 = arith.addf %41, %40 : vector<2x128xf32>
    %43 = arith.divf %41, %42 : vector<2x128xf32>
    %44 = vector.extract_strided_slice %43 {offsets = [0, 0], sizes = [2, 64], strides = [1, 1]} : vector<2x128xf32> to vector<2x64xf32>
    %45 = vector.extract_strided_slice %43 {offsets = [0, 64], sizes = [2, 64], strides = [1, 1]} : vector<2x128xf32> to vector<2x64xf32>
    %46 = vector.extract_strided_slice %34 {offsets = [0, 128], sizes = [2, 64], strides = [1, 1]} : vector<2x192xf32> to vector<2x64xf32>
    %47 = vector.extract_strided_slice %35 {offsets = [0, 128], sizes = [2, 64], strides = [1, 1]} : vector<2x192xf32> to vector<2x64xf32>
    %48 = arith.addf %47, %9 : vector<2x64xf32>
    %49 = arith.mulf %44, %48 : vector<2x64xf32>
    %50 = arith.addf %46, %49 : vector<2x64xf32>
    %51 = math.tanh %50 : vector<2x64xf32>
    %cst_16 = arith.constant 1.000000e+00 : f32
    %52 = vector.broadcast %cst_16 : f32 to vector<2x64xf32>
    %53 = arith.subf %52, %45 : vector<2x64xf32>
    %54 = arith.mulf %53, %51 : vector<2x64xf32>
    %55 = arith.mulf %45, %33 : vector<2x64xf32>
    %56 = arith.addf %54, %55 : vector<2x64xf32>
    %57 = vector.extract_strided_slice %5 {offsets = [4, 0], sizes = [2, 192], strides = [1, 1]} : vector<16x192xf32> to vector<2x192xf32>
    %cst_17 = arith.constant dense<0.000000e+00> : vector<2x192xf32>
    %58 = tpu.matmul %56, %6, %cst_17 {dimension_numbers = #tpu.dot_dimension_numbers<[1], [0], [0], [1], [0, 0, 1, 1], [], []>} : vector<2x64xf32>, vector<64x192xf32>, vector<2x192xf32> -> vector<2x192xf32>
    %59 = vector.extract_strided_slice %57 {offsets = [0, 0], sizes = [2, 128], strides = [1, 1]} : vector<2x192xf32> to vector<2x128xf32>
    %60 = vector.extract_strided_slice %58 {offsets = [0, 0], sizes = [2, 128], strides = [1, 1]} : vector<2x192xf32> to vector<2x128xf32>
    %61 = arith.addf %59, %60 : vector<2x128xf32>
    %62 = arith.negf %61 : vector<2x128xf32>
    %63 = math.exp %62 : vector<2x128xf32>
    %cst_18 = arith.constant 1.000000e+00 : f32
    %64 = vector.broadcast %cst_18 : f32 to vector<2x128xf32>
    %65 = arith.addf %64, %63 : vector<2x128xf32>
    %66 = arith.divf %64, %65 : vector<2x128xf32>
    %67 = vector.extract_strided_slice %66 {offsets = [0, 0], sizes = [2, 64], strides = [1, 1]} : vector<2x128xf32> to vector<2x64xf32>
    %68 = vector.extract_strided_slice %66 {offsets = [0, 64], sizes = [2, 64], strides = [1, 1]} : vector<2x128xf32> to vector<2x64xf32>
    %69 = vector.extract_strided_slice %57 {offsets = [0, 128], sizes = [2, 64], strides = [1, 1]} : vector<2x192xf32> to vector<2x64xf32>
    %70 = vector.extract_strided_slice %58 {offsets = [0, 128], sizes = [2, 64], strides = [1, 1]} : vector<2x192xf32> to vector<2x64xf32>
    %71 = arith.addf %70, %9 : vector<2x64xf32>
    %72 = arith.mulf %67, %71 : vector<2x64xf32>
    %73 = arith.addf %69, %72 : vector<2x64xf32>
    %74 = math.tanh %73 : vector<2x64xf32>
    %cst_19 = arith.constant 1.000000e+00 : f32
    %75 = vector.broadcast %cst_19 : f32 to vector<2x64xf32>
    %76 = arith.subf %75, %68 : vector<2x64xf32>
    %77 = arith.mulf %76, %74 : vector<2x64xf32>
    %78 = arith.mulf %68, %56 : vector<2x64xf32>
    %79 = arith.addf %77, %78 : vector<2x64xf32>
    %80 = vector.extract_strided_slice %5 {offsets = [6, 0], sizes = [2, 192], strides = [1, 1]} : vector<16x192xf32> to vector<2x192xf32>
    %cst_20 = arith.constant dense<0.000000e+00> : vector<2x192xf32>
    %81 = tpu.matmul %79, %6, %cst_20 {dimension_numbers = #tpu.dot_dimension_numbers<[1], [0], [0], [1], [0, 0, 1, 1], [], []>} : vector<2x64xf32>, vector<64x192xf32>, vector<2x192xf32> -> vector<2x192xf32>
    %82 = vector.extract_strided_slice %80 {offsets = [0, 0], sizes = [2, 128], strides = [1, 1]} : vector<2x192xf32> to vector<2x128xf32>
    %83 = vector.extract_strided_slice %81 {offsets = [0, 0], sizes = [2, 128], strides = [1, 1]} : vector<2x192xf32> to vector<2x128xf32>
    %84 = arith.addf %82, %83 : vector<2x128xf32>
    %85 = arith.negf %84 : vector<2x128xf32>
    %86 = math.exp %85 : vector<2x128xf32>
    %cst_21 = arith.constant 1.000000e+00 : f32
    %87 = vector.broadcast %cst_21 : f32 to vector<2x128xf32>
    %88 = arith.addf %87, %86 : vector<2x128xf32>
    %89 = arith.divf %87, %88 : vector<2x128xf32>
    %90 = vector.extract_strided_slice %89 {offsets = [0, 0], sizes = [2, 64], strides = [1, 1]} : vector<2x128xf32> to vector<2x64xf32>
    %91 = vector.extract_strided_slice %89 {offsets = [0, 64], sizes = [2, 64], strides = [1, 1]} : vector<2x128xf32> to vector<2x64xf32>
    %92 = vector.extract_strided_slice %80 {offsets = [0, 128], sizes = [2, 64], strides = [1, 1]} : vector<2x192xf32> to vector<2x64xf32>
    %93 = vector.extract_strided_slice %81 {offsets = [0, 128], sizes = [2, 64], strides = [1, 1]} : vector<2x192xf32> to vector<2x64xf32>
    %94 = arith.addf %93, %9 : vector<2x64xf32>
    %95 = arith.mulf %90, %94 : vector<2x64xf32>
    %96 = arith.addf %92, %95 : vector<2x64xf32>
    %97 = math.tanh %96 : vector<2x64xf32>
    %cst_22 = arith.constant 1.000000e+00 : f32
    %98 = vector.broadcast %cst_22 : f32 to vector<2x64xf32>
    %99 = arith.subf %98, %91 : vector<2x64xf32>
    %100 = arith.mulf %99, %97 : vector<2x64xf32>
    %101 = arith.mulf %91, %79 : vector<2x64xf32>
    %102 = arith.addf %100, %101 : vector<2x64xf32>
    %103 = vector.extract_strided_slice %5 {offsets = [8, 0], sizes = [2, 192], strides = [1, 1]} : vector<16x192xf32> to vector<2x192xf32>
    %cst_23 = arith.constant dense<0.000000e+00> : vector<2x192xf32>
    %104 = tpu.matmul %102, %6, %cst_23 {dimension_numbers = #tpu.dot_dimension_numbers<[1], [0], [0], [1], [0, 0, 1, 1], [], []>} : vector<2x64xf32>, vector<64x192xf32>, vector<2x192xf32> -> vector<2x192xf32>
    %105 = vector.extract_strided_slice %103 {offsets = [0, 0], sizes = [2, 128], strides = [1, 1]} : vector<2x192xf32> to vector<2x128xf32>
    %106 = vector.extract_strided_slice %104 {offsets = [0, 0], sizes = [2, 128], strides = [1, 1]} : vector<2x192xf32> to vector<2x128xf32>
    %107 = arith.addf %105, %106 : vector<2x128xf32>
    %108 = arith.negf %107 : vector<2x128xf32>
    %109 = math.exp %108 : vector<2x128xf32>
    %cst_24 = arith.constant 1.000000e+00 : f32
    %110 = vector.broadcast %cst_24 : f32 to vector<2x128xf32>
    %111 = arith.addf %110, %109 : vector<2x128xf32>
    %112 = arith.divf %110, %111 : vector<2x128xf32>
    %113 = vector.extract_strided_slice %112 {offsets = [0, 0], sizes = [2, 64], strides = [1, 1]} : vector<2x128xf32> to vector<2x64xf32>
    %114 = vector.extract_strided_slice %112 {offsets = [0, 64], sizes = [2, 64], strides = [1, 1]} : vector<2x128xf32> to vector<2x64xf32>
    %115 = vector.extract_strided_slice %103 {offsets = [0, 128], sizes = [2, 64], strides = [1, 1]} : vector<2x192xf32> to vector<2x64xf32>
    %116 = vector.extract_strided_slice %104 {offsets = [0, 128], sizes = [2, 64], strides = [1, 1]} : vector<2x192xf32> to vector<2x64xf32>
    %117 = arith.addf %116, %9 : vector<2x64xf32>
    %118 = arith.mulf %113, %117 : vector<2x64xf32>
    %119 = arith.addf %115, %118 : vector<2x64xf32>
    %120 = math.tanh %119 : vector<2x64xf32>
    %cst_25 = arith.constant 1.000000e+00 : f32
    %121 = vector.broadcast %cst_25 : f32 to vector<2x64xf32>
    %122 = arith.subf %121, %114 : vector<2x64xf32>
    %123 = arith.mulf %122, %120 : vector<2x64xf32>
    %124 = arith.mulf %114, %102 : vector<2x64xf32>
    %125 = arith.addf %123, %124 : vector<2x64xf32>
    %126 = vector.extract_strided_slice %5 {offsets = [10, 0], sizes = [2, 192], strides = [1, 1]} : vector<16x192xf32> to vector<2x192xf32>
    %cst_26 = arith.constant dense<0.000000e+00> : vector<2x192xf32>
    %127 = tpu.matmul %125, %6, %cst_26 {dimension_numbers = #tpu.dot_dimension_numbers<[1], [0], [0], [1], [0, 0, 1, 1], [], []>} : vector<2x64xf32>, vector<64x192xf32>, vector<2x192xf32> -> vector<2x192xf32>
    %128 = vector.extract_strided_slice %126 {offsets = [0, 0], sizes = [2, 128], strides = [1, 1]} : vector<2x192xf32> to vector<2x128xf32>
    %129 = vector.extract_strided_slice %127 {offsets = [0, 0], sizes = [2, 128], strides = [1, 1]} : vector<2x192xf32> to vector<2x128xf32>
    %130 = arith.addf %128, %129 : vector<2x128xf32>
    %131 = arith.negf %130 : vector<2x128xf32>
    %132 = math.exp %131 : vector<2x128xf32>
    %cst_27 = arith.constant 1.000000e+00 : f32
    %133 = vector.broadcast %cst_27 : f32 to vector<2x128xf32>
    %134 = arith.addf %133, %132 : vector<2x128xf32>
    %135 = arith.divf %133, %134 : vector<2x128xf32>
    %136 = vector.extract_strided_slice %135 {offsets = [0, 0], sizes = [2, 64], strides = [1, 1]} : vector<2x128xf32> to vector<2x64xf32>
    %137 = vector.extract_strided_slice %135 {offsets = [0, 64], sizes = [2, 64], strides = [1, 1]} : vector<2x128xf32> to vector<2x64xf32>
    %138 = vector.extract_strided_slice %126 {offsets = [0, 128], sizes = [2, 64], strides = [1, 1]} : vector<2x192xf32> to vector<2x64xf32>
    %139 = vector.extract_strided_slice %127 {offsets = [0, 128], sizes = [2, 64], strides = [1, 1]} : vector<2x192xf32> to vector<2x64xf32>
    %140 = arith.addf %139, %9 : vector<2x64xf32>
    %141 = arith.mulf %136, %140 : vector<2x64xf32>
    %142 = arith.addf %138, %141 : vector<2x64xf32>
    %143 = math.tanh %142 : vector<2x64xf32>
    %cst_28 = arith.constant 1.000000e+00 : f32
    %144 = vector.broadcast %cst_28 : f32 to vector<2x64xf32>
    %145 = arith.subf %144, %137 : vector<2x64xf32>
    %146 = arith.mulf %145, %143 : vector<2x64xf32>
    %147 = arith.mulf %137, %125 : vector<2x64xf32>
    %148 = arith.addf %146, %147 : vector<2x64xf32>
    %149 = vector.extract_strided_slice %5 {offsets = [12, 0], sizes = [2, 192], strides = [1, 1]} : vector<16x192xf32> to vector<2x192xf32>
    %cst_29 = arith.constant dense<0.000000e+00> : vector<2x192xf32>
    %150 = tpu.matmul %148, %6, %cst_29 {dimension_numbers = #tpu.dot_dimension_numbers<[1], [0], [0], [1], [0, 0, 1, 1], [], []>} : vector<2x64xf32>, vector<64x192xf32>, vector<2x192xf32> -> vector<2x192xf32>
    %151 = vector.extract_strided_slice %149 {offsets = [0, 0], sizes = [2, 128], strides = [1, 1]} : vector<2x192xf32> to vector<2x128xf32>
    %152 = vector.extract_strided_slice %150 {offsets = [0, 0], sizes = [2, 128], strides = [1, 1]} : vector<2x192xf32> to vector<2x128xf32>
    %153 = arith.addf %151, %152 : vector<2x128xf32>
    %154 = arith.negf %153 : vector<2x128xf32>
    %155 = math.exp %154 : vector<2x128xf32>
    %cst_30 = arith.constant 1.000000e+00 : f32
    %156 = vector.broadcast %cst_30 : f32 to vector<2x128xf32>
    %157 = arith.addf %156, %155 : vector<2x128xf32>
    %158 = arith.divf %156, %157 : vector<2x128xf32>
    %159 = vector.extract_strided_slice %158 {offsets = [0, 0], sizes = [2, 64], strides = [1, 1]} : vector<2x128xf32> to vector<2x64xf32>
    %160 = vector.extract_strided_slice %158 {offsets = [0, 64], sizes = [2, 64], strides = [1, 1]} : vector<2x128xf32> to vector<2x64xf32>
    %161 = vector.extract_strided_slice %149 {offsets = [0, 128], sizes = [2, 64], strides = [1, 1]} : vector<2x192xf32> to vector<2x64xf32>
    %162 = vector.extract_strided_slice %150 {offsets = [0, 128], sizes = [2, 64], strides = [1, 1]} : vector<2x192xf32> to vector<2x64xf32>
    %163 = arith.addf %162, %9 : vector<2x64xf32>
    %164 = arith.mulf %159, %163 : vector<2x64xf32>
    %165 = arith.addf %161, %164 : vector<2x64xf32>
    %166 = math.tanh %165 : vector<2x64xf32>
    %cst_31 = arith.constant 1.000000e+00 : f32
    %167 = vector.broadcast %cst_31 : f32 to vector<2x64xf32>
    %168 = arith.subf %167, %160 : vector<2x64xf32>
    %169 = arith.mulf %168, %166 : vector<2x64xf32>
    %170 = arith.mulf %160, %148 : vector<2x64xf32>
    %171 = arith.addf %169, %170 : vector<2x64xf32>
    %172 = vector.extract_strided_slice %5 {offsets = [14, 0], sizes = [2, 192], strides = [1, 1]} : vector<16x192xf32> to vector<2x192xf32>
    %cst_32 = arith.constant dense<0.000000e+00> : vector<2x192xf32>
    %173 = tpu.matmul %171, %6, %cst_32 {dimension_numbers = #tpu.dot_dimension_numbers<[1], [0], [0], [1], [0, 0, 1, 1], [], []>} : vector<2x64xf32>, vector<64x192xf32>, vector<2x192xf32> -> vector<2x192xf32>
    %174 = vector.extract_strided_slice %172 {offsets = [0, 0], sizes = [2, 128], strides = [1, 1]} : vector<2x192xf32> to vector<2x128xf32>
    %175 = vector.extract_strided_slice %173 {offsets = [0, 0], sizes = [2, 128], strides = [1, 1]} : vector<2x192xf32> to vector<2x128xf32>
    %176 = arith.addf %174, %175 : vector<2x128xf32>
    %177 = arith.negf %176 : vector<2x128xf32>
    %178 = math.exp %177 : vector<2x128xf32>
    %cst_33 = arith.constant 1.000000e+00 : f32
    %179 = vector.broadcast %cst_33 : f32 to vector<2x128xf32>
    %180 = arith.addf %179, %178 : vector<2x128xf32>
    %181 = arith.divf %179, %180 : vector<2x128xf32>
    %182 = vector.extract_strided_slice %181 {offsets = [0, 0], sizes = [2, 64], strides = [1, 1]} : vector<2x128xf32> to vector<2x64xf32>
    %183 = vector.extract_strided_slice %181 {offsets = [0, 64], sizes = [2, 64], strides = [1, 1]} : vector<2x128xf32> to vector<2x64xf32>
    %184 = vector.extract_strided_slice %172 {offsets = [0, 128], sizes = [2, 64], strides = [1, 1]} : vector<2x192xf32> to vector<2x64xf32>
    %185 = vector.extract_strided_slice %173 {offsets = [0, 128], sizes = [2, 64], strides = [1, 1]} : vector<2x192xf32> to vector<2x64xf32>
    %186 = arith.addf %185, %9 : vector<2x64xf32>
    %187 = arith.mulf %182, %186 : vector<2x64xf32>
    %188 = arith.addf %184, %187 : vector<2x64xf32>
    %189 = math.tanh %188 : vector<2x64xf32>
    %cst_34 = arith.constant 1.000000e+00 : f32
    %190 = vector.broadcast %cst_34 : f32 to vector<2x64xf32>
    %191 = arith.subf %190, %183 : vector<2x64xf32>
    %192 = arith.mulf %191, %189 : vector<2x64xf32>
    %193 = arith.mulf %183, %171 : vector<2x64xf32>
    %194 = arith.addf %192, %193 : vector<2x64xf32>
    %c0_35 = arith.constant 0 : index
    %c0_36 = arith.constant 0 : index
    %195 = vector.load %arg9[%c0_35, %c0_36] : memref<2x64xf32, #tpu.memory_space<vmem>>, vector<2x64xf32>
    tpu.vector_store %arg9[%c0_35, %c0_36], %194 {strides = array<i32>} : memref<2x64xf32, #tpu.memory_space<vmem>>, vector<2x64xf32>,
    %196 = vector.extract_strided_slice %33 {offsets = [0, 0], sizes = [2, 32], strides = [1, 1]} : vector<2x64xf32> to vector<2x32xf32>
    %197 = vector.extract_strided_slice %194 {offsets = [0, 32], sizes = [2, 32], strides = [1, 1]} : vector<2x64xf32> to vector<2x32xf32>
    %198 = arith.addf %196, %197 : vector<2x32xf32>
    %199 = vector.extract_strided_slice %56 {offsets = [0, 0], sizes = [2, 32], strides = [1, 1]} : vector<2x64xf32> to vector<2x32xf32>
    %200 = vector.extract_strided_slice %171 {offsets = [0, 32], sizes = [2, 32], strides = [1, 1]} : vector<2x64xf32> to vector<2x32xf32>
    %201 = arith.addf %199, %200 : vector<2x32xf32>
    %202 = vector.extract_strided_slice %79 {offsets = [0, 0], sizes = [2, 32], strides = [1, 1]} : vector<2x64xf32> to vector<2x32xf32>
    %203 = vector.extract_strided_slice %148 {offsets = [0, 32], sizes = [2, 32], strides = [1, 1]} : vector<2x64xf32> to vector<2x32xf32>
    %204 = arith.addf %202, %203 : vector<2x32xf32>
    %205 = vector.extract_strided_slice %102 {offsets = [0, 0], sizes = [2, 32], strides = [1, 1]} : vector<2x64xf32> to vector<2x32xf32>
    %206 = vector.extract_strided_slice %125 {offsets = [0, 32], sizes = [2, 32], strides = [1, 1]} : vector<2x64xf32> to vector<2x32xf32>
    %207 = arith.addf %205, %206 : vector<2x32xf32>
    %208 = vector.extract_strided_slice %125 {offsets = [0, 0], sizes = [2, 32], strides = [1, 1]} : vector<2x64xf32> to vector<2x32xf32>
    %209 = vector.extract_strided_slice %102 {offsets = [0, 32], sizes = [2, 32], strides = [1, 1]} : vector<2x64xf32> to vector<2x32xf32>
    %210 = arith.addf %208, %209 : vector<2x32xf32>
    %211 = vector.extract_strided_slice %148 {offsets = [0, 0], sizes = [2, 32], strides = [1, 1]} : vector<2x64xf32> to vector<2x32xf32>
    %212 = vector.extract_strided_slice %79 {offsets = [0, 32], sizes = [2, 32], strides = [1, 1]} : vector<2x64xf32> to vector<2x32xf32>
    %213 = arith.addf %211, %212 : vector<2x32xf32>
    %214 = vector.extract_strided_slice %171 {offsets = [0, 0], sizes = [2, 32], strides = [1, 1]} : vector<2x64xf32> to vector<2x32xf32>
    %215 = vector.extract_strided_slice %56 {offsets = [0, 32], sizes = [2, 32], strides = [1, 1]} : vector<2x64xf32> to vector<2x32xf32>
    %216 = arith.addf %214, %215 : vector<2x32xf32>
    %217 = vector.extract_strided_slice %194 {offsets = [0, 0], sizes = [2, 32], strides = [1, 1]} : vector<2x64xf32> to vector<2x32xf32>
    %218 = vector.extract_strided_slice %33 {offsets = [0, 32], sizes = [2, 32], strides = [1, 1]} : vector<2x64xf32> to vector<2x32xf32>
    %219 = arith.addf %217, %218 : vector<2x32xf32>
    %220 = tpu.concatenate %198, %201, %204, %207, %210, %213, %216, %219 in 0 : vector<2x32xf32>, vector<2x32xf32>, vector<2x32xf32>, vector<2x32xf32>, vector<2x32xf32>, vector<2x32xf32>, vector<2x32xf32>, vector<2x32xf32> -> vector<16x32xf32>
    %cst_37 = arith.constant dense<0.000000e+00> : vector<32xf32>
    %221 = vector.multi_reduction <add>, %220, %cst_37 [0] : vector<16x32xf32> to vector<32xf32>
    %222 = vector.shape_cast %221 : vector<32xf32> to vector<1x32xf32>
    %cst_38 = arith.constant 6.250000e-02 : f32
    %223 = vector.broadcast %cst_38 : f32 to vector<1x32xf32>
    %224 = arith.mulf %222, %223 : vector<1x32xf32>
    %225 = vector.broadcast %224 : vector<1x32xf32> to vector<16x32xf32>
    %226 = arith.subf %220, %225 : vector<16x32xf32>
    %227 = arith.mulf %226, %226 : vector<16x32xf32>
    %cst_39 = arith.constant dense<0.000000e+00> : vector<32xf32>
    %228 = vector.multi_reduction <add>, %227, %cst_39 [0] : vector<16x32xf32> to vector<32xf32>
    %229 = vector.shape_cast %228 : vector<32xf32> to vector<1x32xf32>
    %cst_40 = arith.constant 6.250000e-02 : f32
    %230 = vector.broadcast %cst_40 : f32 to vector<1x32xf32>
    %231 = arith.mulf %229, %230 : vector<1x32xf32>
    %c0_41 = arith.constant 0 : index
    %c0_42 = arith.constant 0 : index
    %232 = vector.load %arg6[%c0_41, %c0_42] : memref<1x32xf32, #tpu.memory_space<vmem>>, vector<1x32xf32>
    %cst_43 = arith.constant 9.99999974E-6 : f32
    %233 = vector.broadcast %cst_43 : f32 to vector<1x32xf32>
    %234 = arith.addf %231, %233 : vector<1x32xf32>
    %235 = math.rsqrt %234 : vector<1x32xf32>
    %236 = arith.mulf %232, %235 : vector<1x32xf32>
    %c0_44 = arith.constant 0 : index
    %c0_45 = arith.constant 0 : index
    %237 = vector.load %arg7[%c0_44, %c0_45] : memref<1x32xf32, #tpu.memory_space<vmem>>, vector<1x32xf32>
    %238 = arith.mulf %224, %236 : vector<1x32xf32>
    %239 = arith.subf %237, %238 : vector<1x32xf32>
    %240 = vector.broadcast %236 : vector<1x32xf32> to vector<2x32xf32>
    %241 = arith.mulf %198, %240 : vector<2x32xf32>
    %242 = vector.broadcast %239 : vector<1x32xf32> to vector<2x32xf32>
    %243 = arith.addf %241, %242 : vector<2x32xf32>
    %244 = vector.broadcast %236 : vector<1x32xf32> to vector<2x32xf32>
    %245 = arith.mulf %201, %244 : vector<2x32xf32>
    %246 = vector.broadcast %239 : vector<1x32xf32> to vector<2x32xf32>
    %247 = arith.addf %245, %246 : vector<2x32xf32>
    %248 = vector.broadcast %236 : vector<1x32xf32> to vector<2x32xf32>
    %249 = arith.mulf %204, %248 : vector<2x32xf32>
    %250 = vector.broadcast %239 : vector<1x32xf32> to vector<2x32xf32>
    %251 = arith.addf %249, %250 : vector<2x32xf32>
    %252 = vector.broadcast %236 : vector<1x32xf32> to vector<2x32xf32>
    %253 = arith.mulf %207, %252 : vector<2x32xf32>
    %254 = vector.broadcast %239 : vector<1x32xf32> to vector<2x32xf32>
    %255 = arith.addf %253, %254 : vector<2x32xf32>
    %256 = vector.broadcast %236 : vector<1x32xf32> to vector<2x32xf32>
    %257 = arith.mulf %210, %256 : vector<2x32xf32>
    %258 = vector.broadcast %239 : vector<1x32xf32> to vector<2x32xf32>
    %259 = arith.addf %257, %258 : vector<2x32xf32>
    %260 = vector.broadcast %236 : vector<1x32xf32> to vector<2x32xf32>
    %261 = arith.mulf %213, %260 : vector<2x32xf32>
    %262 = vector.broadcast %239 : vector<1x32xf32> to vector<2x32xf32>
    %263 = arith.addf %261, %262 : vector<2x32xf32>
    %264 = vector.broadcast %236 : vector<1x32xf32> to vector<2x32xf32>
    %265 = arith.mulf %216, %264 : vector<2x32xf32>
    %266 = vector.broadcast %239 : vector<1x32xf32> to vector<2x32xf32>
    %267 = arith.addf %265, %266 : vector<2x32xf32>
    %268 = vector.broadcast %236 : vector<1x32xf32> to vector<2x32xf32>
    %269 = arith.mulf %219, %268 : vector<2x32xf32>
    %270 = vector.broadcast %239 : vector<1x32xf32> to vector<2x32xf32>
    %271 = arith.addf %269, %270 : vector<2x32xf32>
    %272 = tpu.concatenate %243, %247, %251, %255, %259, %263, %267, %271 in 1 : vector<2x32xf32>, vector<2x32xf32>, vector<2x32xf32>, vector<2x32xf32>, vector<2x32xf32>, vector<2x32xf32>, vector<2x32xf32>, vector<2x32xf32> -> vector<2x256xf32>
    %c0_46 = arith.constant 0 : index
    %c0_47 = arith.constant 0 : index
    %273 = vector.load %arg8[%c0_46, %c0_47] : memref<2x256xf32, #tpu.memory_space<vmem>>, vector<2x256xf32>
    tpu.vector_store %arg8[%c0_46, %c0_47], %272 {strides = array<i32>} : memref<2x256xf32, #tpu.memory_space<vmem>>, vector<2x256xf32>,
    return
  }
}

</mosaic_0001>

<llo_original>
// kernel: squeeze.11
$region0: #{squeeze.11}
  %s0 = inlined_call_operand.vmem [shape: f32[2,32], index: 0, kind: input, shape index: {}]
  %s1 = inlined_call_operand.vmem [shape: f32[1,64], index: 1, kind: output, shape index: {}]
  $region1: #{squeeze.11} parent=0
    #allocation0 [shape = 'u8[4096]{0}', space=vmem, size = 0x1000, scoped, tag = 'scoped mem for output reshape']
    #allocation1 [shape = 'u8[4096]{0}', space=vmem, size = 0x1000, scoped, tag = 'scoped mem for input reshape']
    %s3 = sshllo.u32 0, 2
    %v4 = vld [vmem:[%s0] sm:%s3]
    %5 = vst [vmem:[#allocation1] sm:%s3] %v4
    %v6 = vld [vmem:[#allocation1] sm:$0x1]
    %vm7 = vcmask 261120
    %8 = vst.msk [vmem:[#allocation0] sm:$0x1] %vm7, %v6
    %s9 = scalar_lea.vmem [#allocation1], 1
    %v10 = vld [vmem:[%s9] sm:$0x1]
    %11 = vrot.lane.b32.xlu0 %v10, 32
    %v12 = vpop.permute.xlu0 %11
    %vm13 = vcmask 523520
    %14 = vst.msk [vmem:[#allocation0] sm:$0x1] %vm13, %v12
    %s16 = sshllo.u32 0, 1
    %v18 = vld [vmem:[#allocation0] sm:%s16]
    %s19 = sshllo.u32 0, 1
    %20 = vst [vmem:[%s1] sm:%s19] %v18

// kernel: rnn_batch_norm.1
$region0: #{rnn_batch_norm.1}
  #allocation0 [shape = 'u32[]', space=smem, size = 0x4, offset = 0x4, fixed_abs, tag = 'smem constant byte address 0x4 - core index']
  #allocation1 [shape = 'u32[144,128]{1,0:T(1,128)}', space=vmem, size = 0x12000, scoped, tag = 'internal scratch']
  %s0 = inlined_call_operand.vmem [shape: f32[16,32], index: 0, kind: input, shape index: {}]
  %s1 = inlined_call_operand.vmem [shape: f32[32,192], index: 1, kind: input, shape index: {}]
  %s2 = inlined_call_operand.vmem [shape: f32[64,192], index: 2, kind: input, shape index: {}]
  %s3 = inlined_call_operand.vmem [shape: f32[1,192], index: 3, kind: input, shape index: {}]
  %s4 = inlined_call_operand.vmem [shape: f32[1,64], index: 4, kind: input, shape index: {}]
  %s5 = inlined_call_operand.vmem [shape: f32[2,64], index: 5, kind: input, shape index: {}]
  %s6 = inlined_call_operand.vmem [shape: f32[1,32], index: 6, kind: input, shape index: {}]
  %s7 = inlined_call_operand.vmem [shape: f32[1,32], index: 7, kind: input, shape index: {}]
  %s8 = inlined_call_operand.vmem [shape: f32[2,256], index: 8, kind: output, shape index: {0}]
  %s9 = inlined_call_operand.vmem [shape: f32[2,64], index: 9, kind: output, shape index: {1}]
  %10 = xla_tuple %s8, %s9
  %s11 = sld [smem:[#allocation0]]
  $region50: #{rnn_batch_norm.1} parent=0
    _
  %s13 = ssub.s32 1, %s11
  %s14 = scalar_select 0, %s13, %s11
  // Predicated region
  $region2: #{rnn_batch_norm.1} parent=0 // pred_check
    _
  $region3: #{rnn_batch_norm.1} parent=0 // pred_check_branch
    %16 = sbr.rel (0) target = $region5
  $region4: #{rnn_batch_norm.1} parent=0 // pred_region
    _
  $region5: #{rnn_batch_norm.1} parent=0 // pred_fallthru
    _
  // Predicated region
  $region6: #{rnn_batch_norm.1} parent=0 // pred_check
    _
  $region7: #{rnn_batch_norm.1} parent=0 // pred_check_branch
    %18 = sbr.rel (0) target = $region9
  $region8: #{rnn_batch_norm.1} parent=0 // pred_region
    _
  $region9: #{rnn_batch_norm.1} parent=0 // pred_fallthru
    _
  // Predicated region
  $region10: #{rnn_batch_norm.1} parent=0 // pred_check
    _
  $region11: #{rnn_batch_norm.1} parent=0 // pred_check_branch
    %20 = sbr.rel (0) target = $region13
  $region12: #{rnn_batch_norm.1} parent=0 // pred_region
    _
  $region13: #{rnn_batch_norm.1} parent=0 // pred_fallthru
    _
  // Predicated region
  $region14: #{rnn_batch_norm.1} parent=0 // pred_check
    _
  $region15: #{rnn_batch_norm.1} parent=0 // pred_check_branch
    %22 = sbr.rel (0) target = $region17
  $region16: #{rnn_batch_norm.1} parent=0 // pred_region
    _
  $region17: #{rnn_batch_norm.1} parent=0 // pred_fallthru
    _
  // Predicated region
  $region18: #{rnn_batch_norm.1} parent=0 // pred_check
    _
  $region19: #{rnn_batch_norm.1} parent=0 // pred_check_branch
    %24 = sbr.rel (0) target = $region21
  $region20: #{rnn_batch_norm.1} parent=0 // pred_region
    _
  $region21: #{rnn_batch_norm.1} parent=0 // pred_fallthru
    _
  // Predicated region
  $region22: #{rnn_batch_norm.1} parent=0 // pred_check
    _
  $region23: #{rnn_batch_norm.1} parent=0 // pred_check_branch
    %26 = sbr.rel (0) target = $region25
  $region24: #{rnn_batch_norm.1} parent=0 // pred_region
    _
  $region25: #{rnn_batch_norm.1} parent=0 // pred_fallthru
    _
  // Predicated region
  $region26: #{rnn_batch_norm.1} parent=0 // pred_check
    _
  $region27: #{rnn_batch_norm.1} parent=0 // pred_check_branch
    %28 = sbr.rel (0) target = $region29
  $region28: #{rnn_batch_norm.1} parent=0 // pred_region
    _
  $region29: #{rnn_batch_norm.1} parent=0 // pred_fallthru
    _
  // Predicated region
  $region30: #{rnn_batch_norm.1} parent=0 // pred_check
    _
  $region31: #{rnn_batch_norm.1} parent=0 // pred_check_branch
    %30 = sbr.rel (0) target = $region33
  $region32: #{rnn_batch_norm.1} parent=0 // pred_region
    _
  $region33: #{rnn_batch_norm.1} parent=0 // pred_fallthru
    _
  %v31 = vld [vmem:[%s0] sm:$0xff]
  %v32 = vld [vmem:[%s0 + $0x8] sm:$0xff]
  %v33 = vld [vmem:[%s1] sm:$0xff]
  %v34 = vld [vmem:[%s1 + $0x8] sm:$0xff]
  %v35 = vld [vmem:[%s1 + $0x10] sm:$0xff]
  %v36 = vld [vmem:[%s1 + $0x18] sm:$0xff]
  %v37 = vld [vmem:[%s1 + $0x20] sm:$0xff]
  %v38 = vld [vmem:[%s1 + $0x28] sm:$0xff]
  %v39 = vld [vmem:[%s1 + $0x30] sm:$0xff]
  %v40 = vld [vmem:[%s1 + $0x38] sm:$0xff]
  %v41 = vld [vmem:[%s3] sm:$0x3]
  %v43 = vlaneseq
  %v44 = vshrl.u32 %v43, 7
  %v45 = vsub.s32 0, %v44
  %v46 = vrot.slane %v41, %v45
  %v47 = vlaneseq
  %v48 = vshrl.u32 %v47, 7
  %v49 = vsub.s32 1, %v48
  %v50 = vrot.slane %v41, %v49
  %vm53 = vcmask 261120
  %v55 = vsel %vm53, %v31, 0
  %v58 = vsel %vm53, %v32, 0
  %60 = vmatprep.subr.mxu0 %v34
  %61 = vmatpush1.msra.mxu0 %v33
  %62 = vmatprep.subr.mxu0 %v36
  %63 = vmatpush1.msra.mxu0 %v35
  %64 = vmatprep.subr.mxu0 %v38
  %65 = vmatpush1.msra.mxu0 %v37
  %66 = vmatprep.subr.mxu0 %v40
  %67 = vmatpush1.msra.mxu0 %v39
  %68 = vmatprep.subr.mxu0 0.0
  %69 = vmatpush1.msra.mxu0 0.0
  %70 = vmatprep.subr.mxu0 0.0
  %71 = vmatpush1.msra.mxu0 0.0
  %72 = vmatprep.subr.mxu0 0.0
  %73 = vmatpush1.msra.mxu0 0.0
  %74 = vmatprep.subr.mxu0 0.0
  %75 = vmatpush1.msra.mxu0 0.0
  %76 = vmatprep.subr.mxu0 0.0
  %77 = vmatpush1.msra.mxu0 0.0
  %78 = vmatprep.subr.mxu0 0.0
  %79 = vmatpush1.msra.mxu0 0.0
  %80 = vmatprep.subr.mxu0 0.0
  %81 = vmatpush1.msra.mxu0 0.0
  %82 = vmatprep.subr.mxu0 0.0
  %83 = vmatpush1.msra.mxu0 0.0
  %84 = vmatprep.subr.mxu0 0.0
  %85 = vmatpush1.msra.mxu0 0.0
  %86 = vmatprep.subr.mxu0 0.0
  %87 = vmatpush1.msra.mxu0 0.0
  %88 = vmatprep.subr.mxu0 0.0
  %89 = vmatpush1.msra.mxu0 0.0
  %90 = vmatprep.subr.mxu0 0.0
  %91 = vmatpush1.msra.mxu0 0.0
  %92 = vmatprep.subr.mxu0 0.0
  %93 = vmatpush1.msra.mxu0 0.0
  %94 = vmatprep.subr.mxu0 0.0
  %95 = vmatpush1.msra.mxu0 0.0
  %96 = vmatprep.subr.mxu0 0.0
  %97 = vmatpush1.msra.mxu0 0.0
  %98 = vmatprep.subr.mxu0 0.0
  %99 = vmatpush1.msra.mxu0 0.0
  %100 = vmatprep.subr.mxu0 0.0
  %101 = vmatpush1.msra.mxu0 0.0
  %102 = vmatprep.subr.mxu0 0.0
  %103 = vmatpush1.msra.mxu0 0.0
  %104 = vmatprep.subr.mxu0 0.0
  %105 = vmatpush1.msra.mxu0 0.0
  %106 = vmatprep.subr.mxu0 0.0
  %107 = vmatpush1.msra.mxu0 0.0
  %108 = vmatprep.subr.mxu0 0.0
  %109 = vmatpush1.msra.mxu0 0.0
  %110 = vmatprep.subr.mxu0 0.0
  %111 = vmatpush1.msra.mxu0 0.0
  %112 = vmatprep.subr.mxu0 0.0
  %113 = vmatpush1.msra.mxu0 0.0
  %114 = vmatprep.subr.mxu0 0.0
  %115 = vmatpush1.msra.mxu0 0.0
  %116 = vmatprep.subr.mxu0 0.0
  %117 = vmatpush1.msra.mxu0 0.0
  %118 = vmatprep.subr.mxu0 0.0
  %119 = vmatpush1.msra.mxu0 0.0
  %120 = vmatprep.subr.mxu0 0.0
  %121 = vmatpush1.msra.mxu0 0.0
  %122 = vmatprep.subr.mxu0 0.0
  %123 = vmatpush1.msra.mxu0 0.0
  %124 = vmatprep.mubr.f32.mxu0 0.0
  %125 = vmatmul.mubr.f32.gmra.mrb[0].mxu0 %v55
  %v126 = vpop.f32.mrb[0].mxu0
  %v127 = vadd.f32 %v46, %v126
  %v128 = vpop.f32.mrb[0].mxu0
  %v129 = vadd.f32 %v50, %v128
  %130 = vmatprep.mubr.f32.mxu0 0.0
  %131 = vmatmul.mubr.f32.gmra.mrb[0].mxu0 %v58
  %v132 = vpop.f32.mrb[0].mxu0
  %v133 = vadd.f32 %v46, %v132
  %v134 = vpop.f32.mrb[0].mxu0
  %v135 = vadd.f32 %v50, %v134
  %136 = vdwg.mxu0
  %v137 = vld [vmem:[%s2] sm:$0xff]
  %v138 = vld [vmem:[%s2 + $0x8] sm:$0xff]
  %v139 = vld [vmem:[%s2 + $0x10] sm:$0xff]
  %v140 = vld [vmem:[%s2 + $0x18] sm:$0xff]
  %v141 = vld [vmem:[%s2 + $0x20] sm:$0xff]
  %v142 = vld [vmem:[%s2 + $0x28] sm:$0xff]
  %v143 = vld [vmem:[%s2 + $0x30] sm:$0xff]
  %v144 = vld [vmem:[%s2 + $0x38] sm:$0xff]
  %v145 = vld [vmem:[%s2 + $0x40] sm:$0xff]
  %v146 = vld [vmem:[%s2 + $0x48] sm:$0xff]
  %v147 = vld [vmem:[%s2 + $0x50] sm:$0xff]
  %v148 = vld [vmem:[%s2 + $0x58] sm:$0xff]
  %v149 = vld [vmem:[%s2 + $0x60] sm:$0xff]
  %v150 = vld [vmem:[%s2 + $0x68] sm:$0xff]
  %v151 = vld [vmem:[%s2 + $0x70] sm:$0xff]
  %v152 = vld [vmem:[%s2 + $0x78] sm:$0xff]
  %v153 = vld [vmem:[%s4] sm:$0x1]
  %v155 = vlaneseq
  %v156 = vshrl.u32 %v155, 7
  %v157 = vsub.s32 0, %v156
  %v158 = vrot.slane %v153, %v157
  %v160 = vld [vmem:[%s5] sm:$0x3]
  %vm161 = vcmask 523264
  %v163 = vsel %vm161, %v160, 0
  %165 = vmatprep.subr.mxu0 %v138
  %166 = vmatpush1.msra.mxu0 %v137
  %167 = vmatprep.subr.mxu0 %v140
  %168 = vmatpush1.msra.mxu0 %v139
  %169 = vmatprep.subr.mxu0 %v142
  %170 = vmatpush1.msra.mxu0 %v141
  %171 = vmatprep.subr.mxu0 %v144
  %172 = vmatpush1.msra.mxu0 %v143
  %173 = vmatprep.subr.mxu0 %v146
  %174 = vmatpush1.msra.mxu0 %v145
  %175 = vmatprep.subr.mxu0 %v148
  %176 = vmatpush1.msra.mxu0 %v147
  %177 = vmatprep.subr.mxu0 %v150
  %178 = vmatpush1.msra.mxu0 %v149
  %179 = vmatprep.subr.mxu0 %v152
  %180 = vmatpush1.msra.mxu0 %v151
  %181 = vmatprep.subr.mxu0 0.0
  %182 = vmatpush1.msra.mxu0 0.0
  %183 = vmatprep.subr.mxu0 0.0
  %184 = vmatpush1.msra.mxu0 0.0
  %185 = vmatprep.subr.mxu0 0.0
  %186 = vmatpush1.msra.mxu0 0.0
  %187 = vmatprep.subr.mxu0 0.0
  %188 = vmatpush1.msra.mxu0 0.0
  %189 = vmatprep.subr.mxu0 0.0
  %190 = vmatpush1.msra.mxu0 0.0
  %191 = vmatprep.subr.mxu0 0.0
  %192 = vmatpush1.msra.mxu0 0.0
  %193 = vmatprep.subr.mxu0 0.0
  %194 = vmatpush1.msra.mxu0 0.0
  %195 = vmatprep.subr.mxu0 0.0
  %196 = vmatpush1.msra.mxu0 0.0
  %197 = vmatprep.subr.mxu0 0.0
  %198 = vmatpush1.msra.mxu0 0.0
  %199 = vmatprep.subr.mxu0 0.0
  %200 = vmatpush1.msra.mxu0 0.0
  %201 = vmatprep.subr.mxu0 0.0
  %202 = vmatpush1.msra.mxu0 0.0
  %203 = vmatprep.subr.mxu0 0.0
  %204 = vmatpush1.msra.mxu0 0.0
  %205 = vmatprep.subr.mxu0 0.0
  %206 = vmatpush1.msra.mxu0 0.0
  %207 = vmatprep.subr.mxu0 0.0
  %208 = vmatpush1.msra.mxu0 0.0
  %209 = vmatprep.subr.mxu0 0.0
  %210 = vmatpush1.msra.mxu0 0.0
  %211 = vmatprep.subr.mxu0 0.0
  %212 = vmatpush1.msra.mxu0 0.0
  %213 = vmatprep.subr.mxu0 0.0
  %214 = vmatpush1.msra.mxu0 0.0
  %215 = vmatprep.subr.mxu0 0.0
  %216 = vmatpush1.msra.mxu0 0.0
  %217 = vmatprep.subr.mxu0 0.0
  %218 = vmatpush1.msra.mxu0 0.0
  %219 = vmatprep.subr.mxu0 0.0
  %220 = vmatpush1.msra.mxu0 0.0
  %221 = vmatprep.subr.mxu0 0.0
  %222 = vmatpush1.msra.mxu0 0.0
  %223 = vmatprep.subr.mxu0 0.0
  %224 = vmatpush1.msra.mxu0 0.0
  %225 = vmatprep.subr.mxu0 0.0
  %226 = vmatpush1.msra.mxu0 0.0
  %227 = vmatprep.subr.mxu0 0.0
  %228 = vmatpush1.msra.mxu0 0.0
  %229 = vmatprep.mubr.f32.mxu0 0.0
  %230 = vmatmul.mubr.f32.gmra.mrb[0].mxu0 %v163
  %v231 = vpop.f32.mrb[0].mxu0
  %v232 = vadd.f32 0.0, %v231
  %v233 = vpop.f32.mrb[0].mxu0
  %v234 = vadd.f32 0.0, %v233
  %235 = vdwg.mxu0
  %v236 = vadd.f32 %v127, %v232
  %v237 = vxor.u32 %v236, 2147483648
  %v238 = vmul.f32 %v237, 1.442695
  %v239 = vpow.pop %v238
  %v240 = vadd.f32 %v239, 1.0
  %v241 = vrcp.pop %v240
  %v242 = vmul.f32 1.0, %v241
  %v243 = vadd.f32 %v234, %v158
  %v244 = vmul.f32 %v242, %v243
  %v245 = vadd.f32 %v129, %v244
  %v246 = vtanh.pop %v245
  %v247 = vsub.f32 1.0, %v242
  %249 = vrot.lane.b32.xlu0 %v246, 64
  %v250 = vpop.permute.xlu0 %249
  %v252 = vmul.f32 %v247, %v250
  %253 = vrot.lane.b32.xlu0 %v160, 64
  %v254 = vpop.permute.xlu0 %253
  %v256 = vmul.f32 %v242, %v254
  %v257 = vadd.f32 %v252, %v256
  %259 = vrot.lane.b32.xlu0 %v257, 64
  %v260 = vpop.permute.xlu0 %259
  %v261 = vsel %vm161, %v260, 0
  %263 = vmatprep.subr.mxu0 %v138
  %264 = vmatpush1.msra.mxu0 %v137
  %265 = vmatprep.subr.mxu0 %v140
  %266 = vmatpush1.msra.mxu0 %v139
  %267 = vmatprep.subr.mxu0 %v142
  %268 = vmatpush1.msra.mxu0 %v141
  %269 = vmatprep.subr.mxu0 %v144
  %270 = vmatpush1.msra.mxu0 %v143
  %271 = vmatprep.subr.mxu0 %v146
  %272 = vmatpush1.msra.mxu0 %v145
  %273 = vmatprep.subr.mxu0 %v148
  %274 = vmatpush1.msra.mxu0 %v147
  %275 = vmatprep.subr.mxu0 %v150
  %276 = vmatpush1.msra.mxu0 %v149
  %277 = vmatprep.subr.mxu0 %v152
  %278 = vmatpush1.msra.mxu0 %v151
  %279 = vmatprep.subr.mxu0 0.0
  %280 = vmatpush1.msra.mxu0 0.0
  %281 = vmatprep.subr.mxu0 0.0
  %282 = vmatpush1.msra.mxu0 0.0
  %283 = vmatprep.subr.mxu0 0.0
  %284 = vmatpush1.msra.mxu0 0.0
  %285 = vmatprep.subr.mxu0 0.0
  %286 = vmatpush1.msra.mxu0 0.0
  %287 = vmatprep.subr.mxu0 0.0
  %288 = vmatpush1.msra.mxu0 0.0
  %289 = vmatprep.subr.mxu0 0.0
  %290 = vmatpush1.msra.mxu0 0.0
  %291 = vmatprep.subr.mxu0 0.0
  %292 = vmatpush1.msra.mxu0 0.0
  %293 = vmatprep.subr.mxu0 0.0
  %294 = vmatpush1.msra.mxu0 0.0
  %295 = vmatprep.subr.mxu0 0.0
  %296 = vmatpush1.msra.mxu0 0.0
  %297 = vmatprep.subr.mxu0 0.0
  %298 = vmatpush1.msra.mxu0 0.0
  %299 = vmatprep.subr.mxu0 0.0
  %300 = vmatpush1.msra.mxu0 0.0
  %301 = vmatprep.subr.mxu0 0.0
  %302 = vmatpush1.msra.mxu0 0.0
  %303 = vmatprep.subr.mxu0 0.0
  %304 = vmatpush1.msra.mxu0 0.0
  %305 = vmatprep.subr.mxu0 0.0
  %306 = vmatpush1.msra.mxu0 0.0
  %307 = vmatprep.subr.mxu0 0.0
  %308 = vmatpush1.msra.mxu0 0.0
  %309 = vmatprep.subr.mxu0 0.0
  %310 = vmatpush1.msra.mxu0 0.0
  %311 = vmatprep.subr.mxu0 0.0
  %312 = vmatpush1.msra.mxu0 0.0
  %313 = vmatprep.subr.mxu0 0.0
  %314 = vmatpush1.msra.mxu0 0.0
  %315 = vmatprep.subr.mxu0 0.0
  %316 = vmatpush1.msra.mxu0 0.0
  %317 = vmatprep.subr.mxu0 0.0
  %318 = vmatpush1.msra.mxu0 0.0
  %319 = vmatprep.subr.mxu0 0.0
  %320 = vmatpush1.msra.mxu0 0.0
  %321 = vmatprep.subr.mxu0 0.0
  %322 = vmatpush1.msra.mxu0 0.0
  %323 = vmatprep.subr.mxu0 0.0
  %324 = vmatpush1.msra.mxu0 0.0
  %325 = vmatprep.subr.mxu0 0.0
  %326 = vmatpush1.msra.mxu0 0.0
  %327 = vmatprep.mubr.f32.mxu0 0.0
  %328 = vmatmul.mubr.f32.gmra.mrb[0].mxu0 %v261
  %v329 = vpop.f32.mrb[0].mxu0
  %v330 = vadd.f32 0.0, %v329
  %v331 = vpop.f32.mrb[0].mxu0
  %v332 = vadd.f32 0.0, %v331
  %333 = vdwg.mxu0
  %v335 = vrot.slane %v330, 6
  %v337 = vadd.f32 %v127, %v335
  %v338 = vxor.u32 %v337, 2147483648
  %v339 = vmul.f32 %v338, 1.442695
  %v340 = vpow.pop %v339
  %v341 = vadd.f32 %v340, 1.0
  %v342 = vrcp.pop %v341
  %v343 = vmul.f32 1.0, %v342
  %v344 = vadd.f32 %v332, %v158
  %v346 = vrot.slane %v344, 6
  %v348 = vmul.f32 %v343, %v346
  %v349 = vadd.f32 %v129, %v348
  %v350 = vtanh.pop %v349
  %v351 = vsub.f32 1.0, %v343
  %353 = vrot.lane.b32.xlu0 %v350, 64
  %v354 = vpop.permute.xlu0 %353
  %v356 = vmul.f32 %v351, %v354
  %v357 = vrot.slane %v257, 6
  %v359 = vmul.f32 %v343, %v357
  %v360 = vadd.f32 %v356, %v359
  %v362 = vrot.slane %v360, 2
  %363 = vrot.lane.b32.xlu0 %v362, 64
  %v364 = vpop.permute.xlu0 %363
  %v365 = vsel %vm161, %v364, 0
  %367 = vmatprep.subr.mxu0 %v138
  %368 = vmatpush1.msra.mxu0 %v137
  %369 = vmatprep.subr.mxu0 %v140
  %370 = vmatpush1.msra.mxu0 %v139
  %371 = vmatprep.subr.mxu0 %v142
  %372 = vmatpush1.msra.mxu0 %v141
  %373 = vmatprep.subr.mxu0 %v144
  %374 = vmatpush1.msra.mxu0 %v143
  %375 = vmatprep.subr.mxu0 %v146
  %376 = vmatpush1.msra.mxu0 %v145
  %377 = vmatprep.subr.mxu0 %v148
  %378 = vmatpush1.msra.mxu0 %v147
  %379 = vmatprep.subr.mxu0 %v150
  %380 = vmatpush1.msra.mxu0 %v149
  %381 = vmatprep.subr.mxu0 %v152
  %382 = vmatpush1.msra.mxu0 %v151
  %383 = vmatprep.subr.mxu0 0.0
  %384 = vmatpush1.msra.mxu0 0.0
  %385 = vmatprep.subr.mxu0 0.0
  %386 = vmatpush1.msra.mxu0 0.0
  %387 = vmatprep.subr.mxu0 0.0
  %388 = vmatpush1.msra.mxu0 0.0
  %389 = vmatprep.subr.mxu0 0.0
  %390 = vmatpush1.msra.mxu0 0.0
  %391 = vmatprep.subr.mxu0 0.0
  %392 = vmatpush1.msra.mxu0 0.0
  %393 = vmatprep.subr.mxu0 0.0
  %394 = vmatpush1.msra.mxu0 0.0
  %395 = vmatprep.subr.mxu0 0.0
  %396 = vmatpush1.msra.mxu0 0.0
  %397 = vmatprep.subr.mxu0 0.0
  %398 = vmatpush1.msra.mxu0 0.0
  %399 = vmatprep.subr.mxu0 0.0
  %400 = vmatpush1.msra.mxu0 0.0
  %401 = vmatprep.subr.mxu0 0.0
  %402 = vmatpush1.msra.mxu0 0.0
  %403 = vmatprep.subr.mxu0 0.0
  %404 = vmatpush1.msra.mxu0 0.0
  %405 = vmatprep.subr.mxu0 0.0
  %406 = vmatpush1.msra.mxu0 0.0
  %407 = vmatprep.subr.mxu0 0.0
  %408 = vmatpush1.msra.mxu0 0.0
  %409 = vmatprep.subr.mxu0 0.0
  %410 = vmatpush1.msra.mxu0 0.0
  %411 = vmatprep.subr.mxu0 0.0
  %412 = vmatpush1.msra.mxu0 0.0
  %413 = vmatprep.subr.mxu0 0.0
  %414 = vmatpush1.msra.mxu0 0.0
  %415 = vmatprep.subr.mxu0 0.0
  %416 = vmatpush1.msra.mxu0 0.0
  %417 = vmatprep.subr.mxu0 0.0
  %418 = vmatpush1.msra.mxu0 0.0
  %419 = vmatprep.subr.mxu0 0.0
  %420 = vmatpush1.msra.mxu0 0.0
  %421 = vmatprep.subr.mxu0 0.0
  %422 = vmatpush1.msra.mxu0 0.0
  %423 = vmatprep.subr.mxu0 0.0
  %424 = vmatpush1.msra.mxu0 0.0
  %425 = vmatprep.subr.mxu0 0.0
  %426 = vmatpush1.msra.mxu0 0.0
  %427 = vmatprep.subr.mxu0 0.0
  %428 = vmatpush1.msra.mxu0 0.0
  %429 = vmatprep.subr.mxu0 0.0
  %430 = vmatpush1.msra.mxu0 0.0
  %431 = vmatprep.mubr.f32.mxu0 0.0
  %432 = vmatmul.mubr.f32.gmra.mrb[0].mxu0 %v365
  %v433 = vpop.f32.mrb[0].mxu0
  %v434 = vadd.f32 0.0, %v433
  %v435 = vpop.f32.mrb[0].mxu0
  %v436 = vadd.f32 0.0, %v435
  %437 = vdwg.mxu0
  %v439 = vrot.slane %v434, 4
  %v441 = vadd.f32 %v127, %v439
  %v442 = vxor.u32 %v441, 2147483648
  %v443 = vmul.f32 %v442, 1.442695
  %v444 = vpow.pop %v443
  %v445 = vadd.f32 %v444, 1.0
  %v446 = vrcp.pop %v445
  %v447 = vmul.f32 1.0, %v446
  %v448 = vadd.f32 %v436, %v158
  %v450 = vrot.slane %v448, 4
  %v452 = vmul.f32 %v447, %v450
  %v453 = vadd.f32 %v129, %v452
  %v454 = vtanh.pop %v453
  %v455 = vsub.f32 1.0, %v447
  %457 = vrot.lane.b32.xlu0 %v454, 64
  %v458 = vpop.permute.xlu0 %457
  %v460 = vmul.f32 %v455, %v458
  %v461 = vrot.slane %v360, 6
  %v463 = vmul.f32 %v447, %v461
  %v464 = vadd.f32 %v460, %v463
  %v466 = vrot.slane %v464, 4
  %467 = vrot.lane.b32.xlu0 %v466, 64
  %v468 = vpop.permute.xlu0 %467
  %v469 = vsel %vm161, %v468, 0
  %471 = vmatprep.subr.mxu0 %v138
  %472 = vmatpush1.msra.mxu0 %v137
  %473 = vmatprep.subr.mxu0 %v140
  %474 = vmatpush1.msra.mxu0 %v139
  %475 = vmatprep.subr.mxu0 %v142
  %476 = vmatpush1.msra.mxu0 %v141
  %477 = vmatprep.subr.mxu0 %v144
  %478 = vmatpush1.msra.mxu0 %v143
  %479 = vmatprep.subr.mxu0 %v146
  %480 = vmatpush1.msra.mxu0 %v145
  %481 = vmatprep.subr.mxu0 %v148
  %482 = vmatpush1.msra.mxu0 %v147
  %483 = vmatprep.subr.mxu0 %v150
  %484 = vmatpush1.msra.mxu0 %v149
  %485 = vmatprep.subr.mxu0 %v152
  %486 = vmatpush1.msra.mxu0 %v151
  %487 = vmatprep.subr.mxu0 0.0
  %488 = vmatpush1.msra.mxu0 0.0
  %489 = vmatprep.subr.mxu0 0.0
  %490 = vmatpush1.msra.mxu0 0.0
  %491 = vmatprep.subr.mxu0 0.0
  %492 = vmatpush1.msra.mxu0 0.0
  %493 = vmatprep.subr.mxu0 0.0
  %494 = vmatpush1.msra.mxu0 0.0
  %495 = vmatprep.subr.mxu0 0.0
  %496 = vmatpush1.msra.mxu0 0.0
  %497 = vmatprep.subr.mxu0 0.0
  %498 = vmatpush1.msra.mxu0 0.0
  %499 = vmatprep.subr.mxu0 0.0
  %500 = vmatpush1.msra.mxu0 0.0
  %501 = vmatprep.subr.mxu0 0.0
  %502 = vmatpush1.msra.mxu0 0.0
  %503 = vmatprep.subr.mxu0 0.0
  %504 = vmatpush1.msra.mxu0 0.0
  %505 = vmatprep.subr.mxu0 0.0
  %506 = vmatpush1.msra.mxu0 0.0
  %507 = vmatprep.subr.mxu0 0.0
  %508 = vmatpush1.msra.mxu0 0.0
  %509 = vmatprep.subr.mxu0 0.0
  %510 = vmatpush1.msra.mxu0 0.0
  %511 = vmatprep.subr.mxu0 0.0
  %512 = vmatpush1.msra.mxu0 0.0
  %513 = vmatprep.subr.mxu0 0.0
  %514 = vmatpush1.msra.mxu0 0.0
  %515 = vmatprep.subr.mxu0 0.0
  %516 = vmatpush1.msra.mxu0 0.0
  %517 = vmatprep.subr.mxu0 0.0
  %518 = vmatpush1.msra.mxu0 0.0
  %519 = vmatprep.subr.mxu0 0.0
  %520 = vmatpush1.msra.mxu0 0.0
  %521 = vmatprep.subr.mxu0 0.0
  %522 = vmatpush1.msra.mxu0 0.0
  %523 = vmatprep.subr.mxu0 0.0
  %524 = vmatpush1.msra.mxu0 0.0
  %525 = vmatprep.subr.mxu0 0.0
  %526 = vmatpush1.msra.mxu0 0.0
  %527 = vmatprep.subr.mxu0 0.0
  %528 = vmatpush1.msra.mxu0 0.0
  %529 = vmatprep.subr.mxu0 0.0
  %530 = vmatpush1.msra.mxu0 0.0
  %531 = vmatprep.subr.mxu0 0.0
  %532 = vmatpush1.msra.mxu0 0.0
  %533 = vmatprep.subr.mxu0 0.0
  %534 = vmatpush1.msra.mxu0 0.0
  %535 = vmatprep.mubr.f32.mxu0 0.0
  %536 = vmatmul.mubr.f32.gmra.mrb[0].mxu0 %v469
  %v537 = vpop.f32.mrb[0].mxu0
  %v538 = vadd.f32 0.0, %v537
  %v539 = vpop.f32.mrb[0].mxu0
  %v540 = vadd.f32 0.0, %v539
  %541 = vdwg.mxu0
  %v543 = vrot.slane %v538, 2
  %v545 = vadd.f32 %v127, %v543
  %v546 = vxor.u32 %v545, 2147483648
  %v547 = vmul.f32 %v546, 1.442695
  %v548 = vpow.pop %v547
  %v549 = vadd.f32 %v548, 1.0
  %v550 = vrcp.pop %v549
  %v551 = vmul.f32 1.0, %v550
  %v552 = vadd.f32 %v540, %v158
  %v554 = vrot.slane %v552, 2
  %v556 = vmul.f32 %v551, %v554
  %v557 = vadd.f32 %v129, %v556
  %v558 = vtanh.pop %v557
  %v559 = vsub.f32 1.0, %v551
  %561 = vrot.lane.b32.xlu0 %v558, 64
  %v562 = vpop.permute.xlu0 %561
  %v564 = vmul.f32 %v559, %v562
  %v565 = vrot.slane %v464, 6
  %v567 = vmul.f32 %v551, %v565
  %v568 = vadd.f32 %v564, %v567
  %v570 = vrot.slane %v568, 6
  %571 = vrot.lane.b32.xlu0 %v570, 64
  %v572 = vpop.permute.xlu0 %571
  %v573 = vsel %vm161, %v572, 0
  %575 = vmatprep.subr.mxu0 %v138
  %576 = vmatpush1.msra.mxu0 %v137
  %577 = vmatprep.subr.mxu0 %v140
  %578 = vmatpush1.msra.mxu0 %v139
  %579 = vmatprep.subr.mxu0 %v142
  %580 = vmatpush1.msra.mxu0 %v141
  %581 = vmatprep.subr.mxu0 %v144
  %582 = vmatpush1.msra.mxu0 %v143
  %583 = vmatprep.subr.mxu0 %v146
  %584 = vmatpush1.msra.mxu0 %v145
  %585 = vmatprep.subr.mxu0 %v148
  %586 = vmatpush1.msra.mxu0 %v147
  %587 = vmatprep.subr.mxu0 %v150
  %588 = vmatpush1.msra.mxu0 %v149
  %589 = vmatprep.subr.mxu0 %v152
  %590 = vmatpush1.msra.mxu0 %v151
  %591 = vmatprep.subr.mxu0 0.0
  %592 = vmatpush1.msra.mxu0 0.0
  %593 = vmatprep.subr.mxu0 0.0
  %594 = vmatpush1.msra.mxu0 0.0
  %595 = vmatprep.subr.mxu0 0.0
  %596 = vmatpush1.msra.mxu0 0.0
  %597 = vmatprep.subr.mxu0 0.0
  %598 = vmatpush1.msra.mxu0 0.0
  %599 = vmatprep.subr.mxu0 0.0
  %600 = vmatpush1.msra.mxu0 0.0
  %601 = vmatprep.subr.mxu0 0.0
  %602 = vmatpush1.msra.mxu0 0.0
  %603 = vmatprep.subr.mxu0 0.0
  %604 = vmatpush1.msra.mxu0 0.0
  %605 = vmatprep.subr.mxu0 0.0
  %606 = vmatpush1.msra.mxu0 0.0
  %607 = vmatprep.subr.mxu0 0.0
  %608 = vmatpush1.msra.mxu0 0.0
  %609 = vmatprep.subr.mxu0 0.0
  %610 = vmatpush1.msra.mxu0 0.0
  %611 = vmatprep.subr.mxu0 0.0
  %612 = vmatpush1.msra.mxu0 0.0
  %613 = vmatprep.subr.mxu0 0.0
  %614 = vmatpush1.msra.mxu0 0.0
  %615 = vmatprep.subr.mxu0 0.0
  %616 = vmatpush1.msra.mxu0 0.0
  %617 = vmatprep.subr.mxu0 0.0
  %618 = vmatpush1.msra.mxu0 0.0
  %619 = vmatprep.subr.mxu0 0.0
  %620 = vmatpush1.msra.mxu0 0.0
  %621 = vmatprep.subr.mxu0 0.0
  %622 = vmatpush1.msra.mxu0 0.0
  %623 = vmatprep.subr.mxu0 0.0
  %624 = vmatpush1.msra.mxu0 0.0
  %625 = vmatprep.subr.mxu0 0.0
  %626 = vmatpush1.msra.mxu0 0.0
  %627 = vmatprep.subr.mxu0 0.0
  %628 = vmatpush1.msra.mxu0 0.0
  %629 = vmatprep.subr.mxu0 0.0
  %630 = vmatpush1.msra.mxu0 0.0
  %631 = vmatprep.subr.mxu0 0.0
  %632 = vmatpush1.msra.mxu0 0.0
  %633 = vmatprep.subr.mxu0 0.0
  %634 = vmatpush1.msra.mxu0 0.0
  %635 = vmatprep.subr.mxu0 0.0
  %636 = vmatpush1.msra.mxu0 0.0
  %637 = vmatprep.subr.mxu0 0.0
  %638 = vmatpush1.msra.mxu0 0.0
  %639 = vmatprep.mubr.f32.mxu0 0.0
  %640 = vmatmul.mubr.f32.gmra.mrb[0].mxu0 %v573
  %v641 = vpop.f32.mrb[0].mxu0
  %v642 = vadd.f32 0.0, %v641
  %v643 = vpop.f32.mrb[0].mxu0
  %v644 = vadd.f32 0.0, %v643
  %645 = vdwg.mxu0
  %v646 = vadd.f32 %v133, %v642
  %v647 = vxor.u32 %v646, 2147483648
  %v648 = vmul.f32 %v647, 1.442695
  %v649 = vpow.pop %v648
  %v650 = vadd.f32 %v649, 1.0
  %v651 = vrcp.pop %v650
  %v652 = vmul.f32 1.0, %v651
  %v653 = vadd.f32 %v644, %v158
  %v654 = vmul.f32 %v652, %v653
  %v655 = vadd.f32 %v135, %v654
  %v656 = vtanh.pop %v655
  %v657 = vsub.f32 1.0, %v652
  %659 = vrot.lane.b32.xlu0 %v656, 64
  %v660 = vpop.permute.xlu0 %659
  %v662 = vmul.f32 %v657, %v660
  %v664 = vmul.f32 %v652, %v570
  %v665 = vadd.f32 %v662, %v664
  %667 = vrot.lane.b32.xlu0 %v665, 64
  %v668 = vpop.permute.xlu0 %667
  %v669 = vsel %vm161, %v668, 0
  %671 = vmatprep.subr.mxu0 %v138
  %672 = vmatpush1.msra.mxu0 %v137
  %673 = vmatprep.subr.mxu0 %v140
  %674 = vmatpush1.msra.mxu0 %v139
  %675 = vmatprep.subr.mxu0 %v142
  %676 = vmatpush1.msra.mxu0 %v141
  %677 = vmatprep.subr.mxu0 %v144
  %678 = vmatpush1.msra.mxu0 %v143
  %679 = vmatprep.subr.mxu0 %v146
  %680 = vmatpush1.msra.mxu0 %v145
  %681 = vmatprep.subr.mxu0 %v148
  %682 = vmatpush1.msra.mxu0 %v147
  %683 = vmatprep.subr.mxu0 %v150
  %684 = vmatpush1.msra.mxu0 %v149
  %685 = vmatprep.subr.mxu0 %v152
  %686 = vmatpush1.msra.mxu0 %v151
  %687 = vmatprep.subr.mxu0 0.0
  %688 = vmatpush1.msra.mxu0 0.0
  %689 = vmatprep.subr.mxu0 0.0
  %690 = vmatpush1.msra.mxu0 0.0
  %691 = vmatprep.subr.mxu0 0.0
  %692 = vmatpush1.msra.mxu0 0.0
  %693 = vmatprep.subr.mxu0 0.0
  %694 = vmatpush1.msra.mxu0 0.0
  %695 = vmatprep.subr.mxu0 0.0
  %696 = vmatpush1.msra.mxu0 0.0
  %697 = vmatprep.subr.mxu0 0.0
  %698 = vmatpush1.msra.mxu0 0.0
  %699 = vmatprep.subr.mxu0 0.0
  %700 = vmatpush1.msra.mxu0 0.0
  %701 = vmatprep.subr.mxu0 0.0
  %702 = vmatpush1.msra.mxu0 0.0
  %703 = vmatprep.subr.mxu0 0.0
  %704 = vmatpush1.msra.mxu0 0.0
  %705 = vmatprep.subr.mxu0 0.0
  %706 = vmatpush1.msra.mxu0 0.0
  %707 = vmatprep.subr.mxu0 0.0
  %708 = vmatpush1.msra.mxu0 0.0
  %709 = vmatprep.subr.mxu0 0.0
  %710 = vmatpush1.msra.mxu0 0.0
  %711 = vmatprep.subr.mxu0 0.0
  %712 = vmatpush1.msra.mxu0 0.0
  %713 = vmatprep.subr.mxu0 0.0
  %714 = vmatpush1.msra.mxu0 0.0
  %715 = vmatprep.subr.mxu0 0.0
  %716 = vmatpush1.msra.mxu0 0.0
  %717 = vmatprep.subr.mxu0 0.0
  %718 = vmatpush1.msra.mxu0 0.0
  %719 = vmatprep.subr.mxu0 0.0
  %720 = vmatpush1.msra.mxu0 0.0
  %721 = vmatprep.subr.mxu0 0.0
  %722 = vmatpush1.msra.mxu0 0.0
  %723 = vmatprep.subr.mxu0 0.0
  %724 = vmatpush1.msra.mxu0 0.0
  %725 = vmatprep.subr.mxu0 0.0
  %726 = vmatpush1.msra.mxu0 0.0
  %727 = vmatprep.subr.mxu0 0.0
  %728 = vmatpush1.msra.mxu0 0.0
  %729 = vmatprep.subr.mxu0 0.0
  %730 = vmatpush1.msra.mxu0 0.0
  %731 = vmatprep.subr.mxu0 0.0
  %732 = vmatpush1.msra.mxu0 0.0
  %733 = vmatprep.subr.mxu0 0.0
  %734 = vmatpush1.msra.mxu0 0.0
  %735 = vmatprep.mubr.f32.mxu0 0.0
  %736 = vmatmul.mubr.f32.gmra.mrb[0].mxu0 %v669
  %v737 = vpop.f32.mrb[0].mxu0
  %v738 = vadd.f32 0.0, %v737
  %v739 = vpop.f32.mrb[0].mxu0
  %v740 = vadd.f32 0.0, %v739
  %741 = vdwg.mxu0
  %v743 = vrot.slane %v738, 6
  %v745 = vadd.f32 %v133, %v743
  %v746 = vxor.u32 %v745, 2147483648
  %v747 = vmul.f32 %v746, 1.442695
  %v748 = vpow.pop %v747
  %v749 = vadd.f32 %v748, 1.0
  %v750 = vrcp.pop %v749
  %v751 = vmul.f32 1.0, %v750
  %v752 = vadd.f32 %v740, %v158
  %v754 = vrot.slane %v752, 6
  %v756 = vmul.f32 %v751, %v754
  %v757 = vadd.f32 %v135, %v756
  %v758 = vtanh.pop %v757
  %v759 = vsub.f32 1.0, %v751
  %761 = vrot.lane.b32.xlu0 %v758, 64
  %v762 = vpop.permute.xlu0 %761
  %v764 = vmul.f32 %v759, %v762
  %v765 = vrot.slane %v665, 6
  %v767 = vmul.f32 %v751, %v765
  %v768 = vadd.f32 %v764, %v767
  %v770 = vrot.slane %v768, 2
  %771 = vrot.lane.b32.xlu0 %v770, 64
  %v772 = vpop.permute.xlu0 %771
  %v773 = vsel %vm161, %v772, 0
  %775 = vmatprep.subr.mxu0 %v138
  %776 = vmatpush1.msra.mxu0 %v137
  %777 = vmatprep.subr.mxu0 %v140
  %778 = vmatpush1.msra.mxu0 %v139
  %779 = vmatprep.subr.mxu0 %v142
  %780 = vmatpush1.msra.mxu0 %v141
  %781 = vmatprep.subr.mxu0 %v144
  %782 = vmatpush1.msra.mxu0 %v143
  %783 = vmatprep.subr.mxu0 %v146
  %784 = vmatpush1.msra.mxu0 %v145
  %785 = vmatprep.subr.mxu0 %v148
  %786 = vmatpush1.msra.mxu0 %v147
  %787 = vmatprep.subr.mxu0 %v150
  %788 = vmatpush1.msra.mxu0 %v149
  %789 = vmatprep.subr.mxu0 %v152
  %790 = vmatpush1.msra.mxu0 %v151
  %791 = vmatprep.subr.mxu0 0.0
  %792 = vmatpush1.msra.mxu0 0.0
  %793 = vmatprep.subr.mxu0 0.0
  %794 = vmatpush1.msra.mxu0 0.0
  %795 = vmatprep.subr.mxu0 0.0
  %796 = vmatpush1.msra.mxu0 0.0
  %797 = vmatprep.subr.mxu0 0.0
  %798 = vmatpush1.msra.mxu0 0.0
  %799 = vmatprep.subr.mxu0 0.0
  %800 = vmatpush1.msra.mxu0 0.0
  %801 = vmatprep.subr.mxu0 0.0
  %802 = vmatpush1.msra.mxu0 0.0
  %803 = vmatprep.subr.mxu0 0.0
  %804 = vmatpush1.msra.mxu0 0.0
  %805 = vmatprep.subr.mxu0 0.0
  %806 = vmatpush1.msra.mxu0 0.0
  %807 = vmatprep.subr.mxu0 0.0
  %808 = vmatpush1.msra.mxu0 0.0
  %809 = vmatprep.subr.mxu0 0.0
  %810 = vmatpush1.msra.mxu0 0.0
  %811 = vmatprep.subr.mxu0 0.0
  %812 = vmatpush1.msra.mxu0 0.0
  %813 = vmatprep.subr.mxu0 0.0
  %814 = vmatpush1.msra.mxu0 0.0
  %815 = vmatprep.subr.mxu0 0.0
  %816 = vmatpush1.msra.mxu0 0.0
  %817 = vmatprep.subr.mxu0 0.0
  %818 = vmatpush1.msra.mxu0 0.0
  %819 = vmatprep.subr.mxu0 0.0
  %820 = vmatpush1.msra.mxu0 0.0
  %821 = vmatprep.subr.mxu0 0.0
  %822 = vmatpush1.msra.mxu0 0.0
  %823 = vmatprep.subr.mxu0 0.0
  %824 = vmatpush1.msra.mxu0 0.0
  %825 = vmatprep.subr.mxu0 0.0
  %826 = vmatpush1.msra.mxu0 0.0
  %827 = vmatprep.subr.mxu0 0.0
  %828 = vmatpush1.msra.mxu0 0.0
  %829 = vmatprep.subr.mxu0 0.0
  %830 = vmatpush1.msra.mxu0 0.0
  %831 = vmatprep.subr.mxu0 0.0
  %832 = vmatpush1.msra.mxu0 0.0
  %833 = vmatprep.subr.mxu0 0.0
  %834 = vmatpush1.msra.mxu0 0.0
  %835 = vmatprep.subr.mxu0 0.0
  %836 = vmatpush1.msra.mxu0 0.0
  %837 = vmatprep.subr.mxu0 0.0
  %838 = vmatpush1.msra.mxu0 0.0
  %839 = vmatprep.mubr.f32.mxu0 0.0
  %840 = vmatmul.mubr.f32.gmra.mrb[0].mxu0 %v773
  %v841 = vpop.f32.mrb[0].mxu0
  %v842 = vadd.f32 0.0, %v841
  %v843 = vpop.f32.mrb[0].mxu0
  %v844 = vadd.f32 0.0, %v843
  %845 = vdwg.mxu0
  %v847 = vrot.slane %v842, 4
  %v849 = vadd.f32 %v133, %v847
  %v850 = vxor.u32 %v849, 2147483648
  %v851 = vmul.f32 %v850, 1.442695
  %v852 = vpow.pop %v851
  %v853 = vadd.f32 %v852, 1.0
  %v854 = vrcp.pop %v853
  %v855 = vmul.f32 1.0, %v854
  %v856 = vadd.f32 %v844, %v158
  %v858 = vrot.slane %v856, 4
  %v860 = vmul.f32 %v855, %v858
  %v861 = vadd.f32 %v135, %v860
  %v862 = vtanh.pop %v861
  %v863 = vsub.f32 1.0, %v855
  %865 = vrot.lane.b32.xlu0 %v862, 64
  %v866 = vpop.permute.xlu0 %865
  %v868 = vmul.f32 %v863, %v866
  %v869 = vrot.slane %v768, 6
  %v871 = vmul.f32 %v855, %v869
  %v872 = vadd.f32 %v868, %v871
  %v874 = vrot.slane %v872, 4
  %875 = vrot.lane.b32.xlu0 %v874, 64
  %v876 = vpop.permute.xlu0 %875
  %v877 = vsel %vm161, %v876, 0
  %879 = vmatprep.subr.mxu0 %v138
  %880 = vmatpush1.msra.mxu0 %v137
  %881 = vmatprep.subr.mxu0 %v140
  %882 = vmatpush1.msra.mxu0 %v139
  %883 = vmatprep.subr.mxu0 %v142
  %884 = vmatpush1.msra.mxu0 %v141
  %885 = vmatprep.subr.mxu0 %v144
  %886 = vmatpush1.msra.mxu0 %v143
  %887 = vmatprep.subr.mxu0 %v146
  %888 = vmatpush1.msra.mxu0 %v145
  %889 = vmatprep.subr.mxu0 %v148
  %890 = vmatpush1.msra.mxu0 %v147
  %891 = vmatprep.subr.mxu0 %v150
  %892 = vmatpush1.msra.mxu0 %v149
  %893 = vmatprep.subr.mxu0 %v152
  %894 = vmatpush1.msra.mxu0 %v151
  %895 = vmatprep.subr.mxu0 0.0
  %896 = vmatpush1.msra.mxu0 0.0
  %897 = vmatprep.subr.mxu0 0.0
  %898 = vmatpush1.msra.mxu0 0.0
  %899 = vmatprep.subr.mxu0 0.0
  %900 = vmatpush1.msra.mxu0 0.0
  %901 = vmatprep.subr.mxu0 0.0
  %902 = vmatpush1.msra.mxu0 0.0
  %903 = vmatprep.subr.mxu0 0.0
  %904 = vmatpush1.msra.mxu0 0.0
  %905 = vmatprep.subr.mxu0 0.0
  %906 = vmatpush1.msra.mxu0 0.0
  %907 = vmatprep.subr.mxu0 0.0
  %908 = vmatpush1.msra.mxu0 0.0
  %909 = vmatprep.subr.mxu0 0.0
  %910 = vmatpush1.msra.mxu0 0.0
  %911 = vmatprep.subr.mxu0 0.0
  %912 = vmatpush1.msra.mxu0 0.0
  %913 = vmatprep.subr.mxu0 0.0
  %914 = vmatpush1.msra.mxu0 0.0
  %915 = vmatprep.subr.mxu0 0.0
  %916 = vmatpush1.msra.mxu0 0.0
  %917 = vmatprep.subr.mxu0 0.0
  %918 = vmatpush1.msra.mxu0 0.0
  %919 = vmatprep.subr.mxu0 0.0
  %920 = vmatpush1.msra.mxu0 0.0
  %921 = vmatprep.subr.mxu0 0.0
  %922 = vmatpush1.msra.mxu0 0.0
  %923 = vmatprep.subr.mxu0 0.0
  %924 = vmatpush1.msra.mxu0 0.0
  %925 = vmatprep.subr.mxu0 0.0
  %926 = vmatpush1.msra.mxu0 0.0
  %927 = vmatprep.subr.mxu0 0.0
  %928 = vmatpush1.msra.mxu0 0.0
  %929 = vmatprep.subr.mxu0 0.0
  %930 = vmatpush1.msra.mxu0 0.0
  %931 = vmatprep.subr.mxu0 0.0
  %932 = vmatpush1.msra.mxu0 0.0
  %933 = vmatprep.subr.mxu0 0.0
  %934 = vmatpush1.msra.mxu0 0.0
  %935 = vmatprep.subr.mxu0 0.0
  %936 = vmatpush1.msra.mxu0 0.0
  %937 = vmatprep.subr.mxu0 0.0
  %938 = vmatpush1.msra.mxu0 0.0
  %939 = vmatprep.subr.mxu0 0.0
  %940 = vmatpush1.msra.mxu0 0.0
  %941 = vmatprep.subr.mxu0 0.0
  %942 = vmatpush1.msra.mxu0 0.0
  %943 = vmatprep.mubr.f32.mxu0 0.0
  %944 = vmatmul.mubr.f32.gmra.mrb[0].mxu0 %v877
  %v945 = vpop.f32.mrb[0].mxu0
  %v946 = vadd.f32 0.0, %v945
  %v947 = vpop.f32.mrb[0].mxu0
  %v948 = vadd.f32 0.0, %v947
  %949 = vdwg.mxu0
  %v951 = vrot.slane %v946, 2
  %v953 = vadd.f32 %v133, %v951
  %v954 = vxor.u32 %v953, 2147483648
  %v955 = vmul.f32 %v954, 1.442695
  %v956 = vpow.pop %v955
  %v957 = vadd.f32 %v956, 1.0
  %v958 = vrcp.pop %v957
  %v959 = vmul.f32 1.0, %v958
  %v960 = vadd.f32 %v948, %v158
  %v962 = vrot.slane %v960, 2
  %v964 = vmul.f32 %v959, %v962
  %v965 = vadd.f32 %v135, %v964
  %v966 = vtanh.pop %v965
  %v967 = vsub.f32 1.0, %v959
  %969 = vrot.lane.b32.xlu0 %v966, 64
  %v970 = vpop.permute.xlu0 %969
  %v972 = vmul.f32 %v967, %v970
  %v973 = vrot.slane %v872, 6
  %v975 = vmul.f32 %v959, %v973
  %v976 = vadd.f32 %v972, %v975
  %978 = vrot.lane.b32.xlu0 %v976, 64
  %v979 = vpop.permute.xlu0 %978
  %vm981 = vcmask 523270
  %982 = vst.msk [vmem:[%s9 - $0x6] sm:$0xc0] %vm981, %v979
  %v983 = vrot.slane %v976, 6
  %984 = vrot.lane.b32.xlu0 %v983, 96
  %v985 = vpop.permute.xlu0 %984
  %v987 = vadd.f32 %v257, %v985
  %v988 = vrot.slane %v872, 2
  %989 = vrot.lane.b32.xlu0 %v988, 96
  %v990 = vpop.permute.xlu0 %989
  %v992 = vadd.f32 %v360, %v990
  %993 = vrot.lane.b32.xlu0 %v869, 96
  %v994 = vpop.permute.xlu0 %993
  %v996 = vadd.f32 %v464, %v994
  %v997 = vrot.slane %v665, 2
  %998 = vrot.lane.b32.xlu0 %v997, 96
  %v999 = vpop.permute.xlu0 %998
  %v1001 = vadd.f32 %v568, %v999
  %1002 = vrot.lane.b32.xlu0 %v570, 96
  %v1003 = vpop.permute.xlu0 %1002
  %v1005 = vadd.f32 %v665, %v1003
  %v1006 = vrot.slane %v464, 2
  %1007 = vrot.lane.b32.xlu0 %v1006, 96
  %v1008 = vpop.permute.xlu0 %1007
  %v1010 = vadd.f32 %v768, %v1008
  %1011 = vrot.lane.b32.xlu0 %v461, 96
  %v1012 = vpop.permute.xlu0 %1011
  %v1014 = vadd.f32 %v872, %v1012
  %v1015 = vrot.slane %v257, 2
  %1016 = vrot.lane.b32.xlu0 %v1015, 96
  %v1017 = vpop.permute.xlu0 %1016
  %v1019 = vadd.f32 %v976, %v1017
  %vm1020 = vcmask 1041408
  %v1021 = vsel %vm1020, %v987, %v992
  %vm1022 = vcmask 1043456
  %v1023 = vsel %vm1022, %v1021, %v996
  %vm1024 = vcmask 1045504
  %v1025 = vsel %vm1024, %v1023, %v1001
  %v1026 = vsel %vm1020, %v1005, %v1010
  %v1027 = vsel %vm1022, %v1026, %v1014
  %v1028 = vsel %vm1024, %v1027, %v1019
  %vm1029 = vcmask 785920
  %v1030 = vsel %vm1029, %v1025, 0.0
  %v1031 = vsel %vm1029, %v1028, 0.0
  %v1032 = vadd.f32 %v1030, %v1031
  %v1033 = vrot.slane %v1032, 4
  %v1034 = vadd.f32 %v1032, %v1033
  %v1035 = vrot.slane %v1034, 2
  %v1036 = vadd.f32 %v1034, %v1035
  %v1037 = vrot.slane %v1036, 1
  %v1038 = vadd.f32 %v1036, %v1037
  %v1039 = vmul.f32 %v1038, 0.0625
  %v1040 = vsub.f32 %v1025, %v1039
  %v1041 = vsub.f32 %v1028, %v1039
  %v1042 = vmul.f32 %v1040, %v1040
  %v1043 = vmul.f32 %v1041, %v1041
  %v1044 = vsel %vm1029, %v1042, 0.0
  %v1045 = vsel %vm1029, %v1043, 0.0
  %v1046 = vadd.f32 %v1044, %v1045
  %v1047 = vrot.slane %v1046, 4
  %v1048 = vadd.f32 %v1046, %v1047
  %v1049 = vrot.slane %v1048, 2
  %v1050 = vadd.f32 %v1048, %v1049
  %v1051 = vrot.slane %v1050, 1
  %v1052 = vadd.f32 %v1050, %v1051
  %v1053 = vmul.f32 %v1052, 0.0625
  %v1054 = vld [vmem:[%s6] sm:$0x1]
  %v1055 = vadd.f32 %v1053, 1e-05
  %v1056 = vrsqrt.pop %v1055
  %v1059 = vunpack.c.l.s4 1966171168
  %v1060 = vunpack.c.0.s8 %v1059
  %v1061 = vlaneseq
  %v1062 = vshrl.u32 %v1061, 7
  %v1063 = vsub.s32 %v1060, %v1062
  %v1064 = vrot.slane %v1056, %v1063
  %v1066 = vunpack.c.l.s4 1966171168
  %v1067 = vunpack.c.0.s8 %v1066
  %v1068 = vlaneseq
  %v1069 = vshrl.u32 %v1068, 7
  %v1070 = vsub.s32 %v1067, %v1069
  %v1071 = vrot.slane %v1064, %v1070
  %1072 = vrot.lane.b32.xlu0 %v1071, 64
  %v1073 = vpop.permute.xlu0 %1072
  %v1075 = vmul.f32 %v1054, %v1073
  %v1076 = vld [vmem:[%s7] sm:$0x1]
  %v1078 = vlaneseq
  %v1079 = vshrl.u32 %v1078, 7
  %v1080 = vsub.s32 0, %v1079
  %v1081 = vrot.slane %v1075, %v1080
  %1082 = vrot.lane.b32.xlu0 %v1081, 64
  %v1083 = vpop.permute.xlu0 %1082
  %v1085 = vmul.f32 %v1039, %v1083
  %v1088 = vunpack.c.l.s4 1966171168
  %v1089 = vunpack.c.0.s8 %v1088
  %v1090 = vlaneseq
  %v1091 = vshrl.u32 %v1090, 7
  %v1092 = vsub.s32 %v1089, %v1091
  %v1093 = vrot.slane %v1085, %v1092
  %v1095 = vunpack.c.l.s4 1966171168
  %v1096 = vunpack.c.0.s8 %v1095
  %v1097 = vlaneseq
  %v1098 = vshrl.u32 %v1097, 7
  %v1099 = vsub.s32 %v1096, %v1098
  %v1100 = vrot.slane %v1093, %v1099
  %1101 = vrot.lane.b32.xlu0 %v1100, 64
  %v1102 = vpop.permute.xlu0 %1101
  %v1104 = vsub.f32 %v1076, %v1102
  %v1105 = vmul.f32 %v987, %v1083
  %v1107 = vlaneseq
  %v1108 = vshrl.u32 %v1107, 7
  %v1109 = vsub.s32 0, %v1108
  %v1110 = vrot.slane %v1104, %v1109
  %1111 = vrot.lane.b32.xlu0 %v1110, 64
  %v1112 = vpop.permute.xlu0 %1111
  %v1114 = vadd.f32 %v1105, %v1112
  %v1115 = vmul.f32 %v992, %v1083
  %v1116 = vadd.f32 %v1115, %v1112
  %v1117 = vmul.f32 %v996, %v1083
  %v1118 = vadd.f32 %v1117, %v1112
  %v1119 = vmul.f32 %v1001, %v1083
  %v1120 = vadd.f32 %v1119, %v1112
  %v1121 = vmul.f32 %v1005, %v1083
  %v1122 = vadd.f32 %v1121, %v1112
  %v1123 = vmul.f32 %v1010, %v1083
  %v1124 = vadd.f32 %v1123, %v1112
  %v1125 = vmul.f32 %v1014, %v1083
  %v1126 = vadd.f32 %v1125, %v1112
  %v1127 = vmul.f32 %v1019, %v1083
  %v1128 = vadd.f32 %v1127, %v1112
  %1130 = vrot.lane.b32.xlu0 %v1114, 64
  %v1131 = vpop.permute.xlu0 %1130
  %v1134 = vrot.slane %v1116, 2
  %1135 = vrot.lane.b32.xlu0 %v1134, 96
  %v1136 = vpop.permute.xlu0 %1135
  %v1139 = vrot.slane %v1118, 4
  %v1142 = vrot.slane %v1120, 6
  %1143 = vrot.lane.b32.xlu0 %v1142, 32
  %v1144 = vpop.permute.xlu0 %1143
  %1147 = vrot.lane.b32.xlu0 %v1122, 64
  %v1148 = vpop.permute.xlu0 %1147
  %v1151 = vrot.slane %v1124, 2
  %1152 = vrot.lane.b32.xlu0 %v1151, 96
  %v1153 = vpop.permute.xlu0 %1152
  %v1156 = vrot.slane %v1126, 4
  %v1159 = vrot.slane %v1128, 6
  %1160 = vrot.lane.b32.xlu0 %v1159, 32
  %v1161 = vpop.permute.xlu0 %1160
  %v1163 = vsel %vm53, %v1131, %v1136
  %v1164 = vsel %vm161, %v1163, %v1139
  %vm1165 = vcmask 785408
  %v1166 = vsel %vm1165, %v1164, %v1144
  %v1167 = vsel %vm53, %v1148, %v1153
  %v1168 = vsel %vm161, %v1167, %v1156
  %v1169 = vsel %vm1165, %v1168, %v1161
  %v1172 = vcombine.low %v1166, %v1169
  %v1174 = vunpack.c.l.s4 1983009808
  %v1175 = vunpack.c.0.s8 %v1174
  %v1176 = vlaneseq
  %v1177 = vshrl.u32 %v1176, 7
  %v1178 = vsub.s32 %v1175, %v1177
  %v1179 = vrot.slane %v1172, %v1178
  %1181 = vst [vmem:[%s8] sm:$0xf] %v1179
  // Predicated region
  $region34: #{rnn_batch_norm.1} parent=0 // pred_check
    _
  $region35: #{rnn_batch_norm.1} parent=0 // pred_check_branch
    %1183 = sbr.rel (0) target = $region37
  $region36: #{rnn_batch_norm.1} parent=0 // pred_region
    _
  $region37: #{rnn_batch_norm.1} parent=0 // pred_fallthru
    _
  // Predicated region
  $region38: #{rnn_batch_norm.1} parent=0 // pred_check
    _
  $region39: #{rnn_batch_norm.1} parent=0 // pred_check_branch
    %1185 = sbr.rel (0) target = $region41
  $region40: #{rnn_batch_norm.1} parent=0 // pred_region
    _
  $region41: #{rnn_batch_norm.1} parent=0 // pred_fallthru
    _
  // Predicated region
  $region42: #{rnn_batch_norm.1} parent=0 // pred_check
    _
  $region43: #{rnn_batch_norm.1} parent=0 // pred_check_branch
    %1187 = sbr.rel (0) target = $region45
  $region44: #{rnn_batch_norm.1} parent=0 // pred_region
    _
  $region45: #{rnn_batch_norm.1} parent=0 // pred_fallthru
    _
  // Predicated region
  $region46: #{rnn_batch_norm.1} parent=0 // pred_check
    _
  $region47: #{rnn_batch_norm.1} parent=0 // pred_check_branch
    %1189 = sbr.rel (0) target = $region49
  $region48: #{rnn_batch_norm.1} parent=0 // pred_region
    _
  $region49: #{rnn_batch_norm.1} parent=0 // pred_fallthru
    _

</llo_original>
